<compile_context>
chip_gen: v7x
topology: tpu7x:2x2x1
jax: 0.10.0
libtpu: 0.0.40
codegen_flags: <defaults>
</compile_context>

<pallas_src>
import functools

import jax
import jax.numpy as jnp
from jax.experimental import pallas as pl
from jax.experimental.pallas import tpu as pltpu

BN_EPS = 1e-5
GIN_EPS = 0.0


def _round_up(x, m):
    return (x + m - 1) // m * m


def _pad_to(a, shape):
    return jnp.pad(a, [(0, s - d) for s, d in zip(shape, a.shape)])


def rgin_kernel(adj_ref, x_ref, wsl_ref, bsl_ref, w1_ref, bnb_ref, w2_ref,
                out_ref, *, n_nodes):
    """adj_ref: (R*Np, Np) bf16 stacked dense adjacency (dst-major per relation).
    x_ref: (Np, Fp_in) f32.  wsl_ref: (Fp_in, Fp_out).  bsl_ref: (1, Fp_out).
    w1_ref: (R, Fp_in, Fp_out).  bnb_ref: (R, 4, Fp_out) packed [b1, gamma, beta, b2].
    w2_ref: (R, Fp_out, Fp_out).  out_ref: (Np, Fp_out) f32."""
    n_pad = x_ref.shape[0]
    num_relations = w1_ref.shape[0]

    x = x_ref[...]                                                  # (Np, Fp_in) f32

    # Self-loop linear.
    acc = jnp.dot(x, wsl_ref[...], preferred_element_type=jnp.float32) + bsl_ref[...]

    # Stacked aggregation: one big MXU matmul for all relations.
    adj = adj_ref[...].astype(jnp.float32)                          # (R*Np, Np)
    agg = jnp.dot(adj, x, preferred_element_type=jnp.float32)       # (R*Np, Fp_in)

    # Row mask over real nodes for BatchNorm statistics (padded rows excluded).
    row = jax.lax.broadcasted_iota(jnp.int32, (n_pad, 1), 0)
    mask = (row < n_nodes).astype(jnp.float32)
    inv_n = 1.0 / float(n_nodes)

    # Static unrolled loop over relations (weights resident in VMEM).
    for r in range(num_relations):
        bnb_r = bnb_ref[r]                                          # (4, Fp_out)
        b1 = bnb_r[0:1, :]
        gamma = bnb_r[1:2, :]
        beta = bnb_r[2:3, :]
        b2 = bnb_r[3:4, :]

        h0 = (1.0 + GIN_EPS) * x + agg[r * n_pad:(r + 1) * n_pad, :]
        h1 = jnp.dot(h0, w1_ref[r], preferred_element_type=jnp.float32) + b1

        # BatchNorm1d, training mode: batch mean / biased variance over the real nodes.
        mean = jnp.sum(h1 * mask, axis=0, keepdims=True) * inv_n
        d = h1 - mean
        var = jnp.sum((d * d) * mask, axis=0, keepdims=True) * inv_n
        h1n = d * jax.lax.rsqrt(var + BN_EPS) * gamma + beta
        h1r = jnp.maximum(h1n, 0.0)

        acc = acc + jnp.dot(h1r, w2_ref[r], preferred_element_type=jnp.float32) + b2

    out_ref[...] = acc                                              # lane-dense (Fp_out % 128 == 0)


def rgin_forward(x, edge_index, edge_type, params, num_relations):
    """x: [N, Fin] f32, edge_index: [2, E] i32 (row 0 = src, row 1 = dst),
    edge_type: [E] i32 in [0, num_relations)."""
    n, fin = x.shape
    fout = params["wsl"].shape[1]

    # Lane-dense / aligned padded sizes.
    n_pad = _round_up(n, 128)
    fp_in = _round_up(fin, 128)
    fp_out = _round_up(fout, 128)

    # Glue (outside kernel): dense stacked per-relation adjacency via scatter-add,
    # carried as bf16 (edge multiplicities exact up to 256).
    src = edge_index[0].astype(jnp.int32)
    dst = edge_index[1].astype(jnp.int32)
    et = edge_type.astype(jnp.int32)
    adj = jnp.zeros((num_relations * n_pad, n_pad), jnp.float32)
    adj = adj.at[et * n_pad + dst, src].add(1.0)
    adj = adj.astype(jnp.bfloat16)

    # Zero-padded operands (padding is exact: padded rows/cols contribute zeros and are sliced off).
    x_p = _pad_to(x, (n_pad, fp_in))
    wsl_p = _pad_to(params["wsl"], (fp_in, fp_out))
    bsl_p = _pad_to(params["bsl"], (1, fp_out))
    w1_p = _pad_to(params["w1"], (num_relations, fp_in, fp_out))
    w2_p = _pad_to(params["w2"], (num_relations, fp_out, fp_out))
    bnb = jnp.concatenate(
        [params["b1"], params["gamma"], params["beta"], params["b2"]], axis=1)   # (R, 4, fout)
    bnb = _pad_to(bnb, (num_relations, 4, fp_out))

    # Cost estimate (helps XLA overlap the scatter-add producer with the kernel's DMAs).
    flops = (2 * num_relations * n_pad * n_pad * fp_in            # aggregation
             + 2 * n_pad * fp_in * fp_out                         # self-loop
             + 2 * num_relations * n_pad * fp_in * fp_out         # lin1
             + 2 * num_relations * n_pad * fp_out * fp_out        # lin2
             + 8 * num_relations * n_pad * fp_out)                # BN / ReLU elementwise
    in_bytes = sum(int(a.size) * a.dtype.itemsize
                   for a in (adj, x_p, wsl_p, bsl_p, w1_p, bnb, w2_p))
    out_bytes = n_pad * fp_out * 4
    cost = pl.CostEstimate(flops=int(flops),
                           transcendentals=int(num_relations * fp_out),
                           bytes_accessed=int(in_bytes + out_bytes))

    # Explicit VMEM budget: inputs + f32 adj upcast + stacked agg + a few (Np, Fp_out) temps,
    # with 2x margin; clamped to be safe on v7x's 64 MiB physical VMEM.
    tmp_bytes = (2 * int(adj.size)                    # adj upcast to f32 (bf16->f32 doubles)
                 + num_relations * n_pad * fp_in * 4  # stacked agg
                 + 4 * n_pad * fp_out * 4)            # h1 / h1n / h2 / acc class temps
    vmem_limit = int(min(64 << 20, max(16 << 20, 2 * (in_bytes + tmp_bytes + out_bytes) + (4 << 20))))

    vmem_spec = pl.BlockSpec(memory_space=pltpu.MemorySpace.VMEM)
    out = pl.pallas_call(
        functools.partial(rgin_kernel, n_nodes=n),
        out_shape=jax.ShapeDtypeStruct((n_pad, fp_out), jnp.float32),
        in_specs=[vmem_spec] * 7,
        out_specs=vmem_spec,
        compiler_params=pltpu.CompilerParams(vmem_limit_bytes=vmem_limit),
        cost_estimate=cost,
    )(adj, x_p, wsl_p, bsl_p, w1_p, bnb, w2_p)

    return out[:n, :fout]


def ref_forward(x, edge_index, edge_type, params, num_relations):
    n = x.shape[0]
    src, dst = edge_index[0], edge_index[1]
    adj = jnp.zeros((num_relations, n, n), jnp.float32).at[edge_type, dst, src].add(1.0)
    out = x @ params["wsl"] + params["bsl"][0]
    for r in range(num_relations):
        h0 = (1.0 + GIN_EPS) * x + adj[r] @ x
        h1 = h0 @ params["w1"][r] + params["b1"][r, 0]
        mean = h1.mean(0, keepdims=True)
        var = ((h1 - mean) ** 2).mean(0, keepdims=True)
        h1n = (h1 - mean) / jnp.sqrt(var + BN_EPS) * params["gamma"][r, 0] + params["beta"][r, 0]
        out = out + jnp.maximum(h1n, 0.0) @ params["w2"][r] + params["b2"][r, 0]
    return out


def init_params(key, in_features, out_features, num_relations):
    ks = jax.random.split(key, 6)
    scale_in = 1.0 / jnp.sqrt(in_features)
    scale_out = 1.0 / jnp.sqrt(out_features)
    return {
        "wsl": jax.random.normal(ks[0], (in_features, out_features), jnp.float32) * scale_in,
        "bsl": jax.random.normal(ks[1], (1, out_features), jnp.float32) * 0.1,
        "w1": jax.random.normal(ks[2], (num_relations, in_features, out_features), jnp.float32) * scale_in,
        "b1": jax.random.normal(ks[3], (num_relations, 1, out_features), jnp.float32) * 0.1,
        "gamma": jnp.ones((num_relations, 1, out_features), jnp.float32),
        "beta": jnp.zeros((num_relations, 1, out_features), jnp.float32),
        "w2": jax.random.normal(ks[4], (num_relations, out_features, out_features), jnp.float32) * scale_out,
        "b2": jax.random.normal(ks[5], (num_relations, 1, out_features), jnp.float32) * 0.1,
    }


if __name__ == "__main__":
    N, F_IN, F_OUT, R, E = 32, 16, 32, 3, 64

    key = jax.random.PRNGKey(0)
    kx, ke_src, ke_dst, ke_type, kp = jax.random.split(key, 5)

    x = jax.random.normal(kx, (N, F_IN), jnp.float32)
    edge_index = jnp.stack([
        jax.random.randint(ke_src, (E,), 0, N, jnp.int32),
        jax.random.randint(ke_dst, (E,), 0, N, jnp.int32),
    ], axis=0)                                                      # [2, E]
    edge_type = jax.random.randint(ke_type, (E,), 0, R, jnp.int32)  # [E]

    params = init_params(kp, F_IN, F_OUT, R)

    fwd = jax.jit(functools.partial(rgin_forward, num_relations=R))
    out = fwd(x, edge_index, edge_type, params)
    out = jax.block_until_ready(out)

    ref = ref_forward(x, edge_index, edge_type, params, R)
    assert out.shape == (N, F_OUT)
    assert jnp.allclose(out, ref, rtol=1e-4, atol=1e-4), float(jnp.max(jnp.abs(out - ref)))

    print("KERNEL_OK")
</pallas_src>

<mosaic_0001>
module attributes {stable_mosaic.version = 11 : i64} {
  func.func private @main(%arg0: i32) attributes {dimension_semantics = [#tpu.dimension_semantics<core_parallel>], iteration_bounds = array<i64: 2>, tpu.core_type = #tpu.core_type<sc_scalar_subcore>, window_params = []} {
    return
  }
}

module attributes {stable_mosaic.version = 11 : i64} {
  func.func private @main(%arg0: i32) attributes {dimension_semantics = [#tpu.dimension_semantics<core_parallel>], iteration_bounds = array<i64: 2>, tpu.core_type = #tpu.core_type<sc_scalar_subcore>, window_params = []} {
    return
  }
}

module attributes {stable_mosaic.version = 11 : i64} {
  func.func @rgin_kernel(%arg0: memref<384x128xbf16, #tpu.memory_space<vmem>>, %arg1: memref<128x128xf32, #tpu.memory_space<vmem>>, %arg2: memref<128x128xf32, #tpu.memory_space<vmem>>, %arg3: memref<1x128xf32, #tpu.memory_space<vmem>>, %arg4: memref<3x128x128xf32, #tpu.memory_space<vmem>>, %arg5: memref<3x4x128xf32, #tpu.memory_space<vmem>>, %arg6: memref<3x128x128xf32, #tpu.memory_space<vmem>>, %arg7: memref<128x128xf32, #tpu.memory_space<vmem>>) attributes {dimension_semantics = [], scalar_prefetch = 0 : i64, scratch_operands = 0 : i64, tpu.core_type = #tpu.core_type<tc>} {
    %c0 = arith.constant 0 : index
    %c0_0 = arith.constant 0 : index
    %0 = vector.load %arg1[%c0, %c0_0] : memref<128x128xf32, #tpu.memory_space<vmem>>, vector<128x128xf32>
    %c0_1 = arith.constant 0 : index
    %c0_2 = arith.constant 0 : index
    %1 = vector.load %arg2[%c0_1, %c0_2] : memref<128x128xf32, #tpu.memory_space<vmem>>, vector<128x128xf32>
    %cst = arith.constant dense<0.000000e+00> : vector<128x128xf32>
    %2 = tpu.matmul %0, %1, %cst {dimension_numbers = #tpu.dot_dimension_numbers<[1], [0], [0], [1], [0, 0, 1, 1], [], []>} : vector<128x128xf32>, vector<128x128xf32>, vector<128x128xf32> -> vector<128x128xf32>
    %c0_3 = arith.constant 0 : index
    %c0_4 = arith.constant 0 : index
    %3 = vector.load %arg3[%c0_3, %c0_4] : memref<1x128xf32, #tpu.memory_space<vmem>>, vector<1x128xf32>
    %4 = vector.broadcast %3 : vector<1x128xf32> to vector<128x128xf32>
    %5 = arith.addf %2, %4 : vector<128x128xf32>
    %c0_5 = arith.constant 0 : index
    %c0_6 = arith.constant 0 : index
    %6 = vector.load %arg0[%c0_5, %c0_6] : memref<384x128xbf16, #tpu.memory_space<vmem>>, vector<384x128xbf16>
    %7 = arith.extf %6 : vector<384x128xbf16> to vector<384x128xf32>
    %cst_7 = arith.constant dense<0.000000e+00> : vector<384x128xf32>
    %8 = tpu.matmul %7, %0, %cst_7 {dimension_numbers = #tpu.dot_dimension_numbers<[1], [0], [0], [1], [0, 0, 1, 1], [], []>} : vector<384x128xf32>, vector<128x128xf32>, vector<384x128xf32> -> vector<384x128xf32>
    %9 = tpu.iota {dimensions = array<i32: 0>} : vector<128x1xi32>
    %c32_i32 = arith.constant 32 : i32
    %10 = vector.broadcast %c32_i32 : i32 to vector<128x1xi32>
    %11 = arith.cmpi slt, %9, %10 : vector<128x1xi32>
    %12 = arith.extui %11 : vector<128x1xi1> to vector<128x1xi32>
    %13 = arith.sitofp %12 : vector<128x1xi32> to vector<128x1xf32>
    %c0_8 = arith.constant 0 : index
    %c0_9 = arith.constant 0 : index
    %c0_10 = arith.constant 0 : index
    %14 = vector.load %arg5[%c0_8, %c0_9, %c0_10] : memref<3x4x128xf32, #tpu.memory_space<vmem>>, vector<1x4x128xf32>
    %15 = vector.shape_cast %14 : vector<1x4x128xf32> to vector<4x128xf32>
    %16 = vector.extract_strided_slice %15 {offsets = [0, 0], sizes = [1, 128], strides = [1, 1]} : vector<4x128xf32> to vector<1x128xf32>
    %17 = vector.extract_strided_slice %15 {offsets = [1, 0], sizes = [1, 128], strides = [1, 1]} : vector<4x128xf32> to vector<1x128xf32>
    %18 = vector.extract_strided_slice %15 {offsets = [2, 0], sizes = [1, 128], strides = [1, 1]} : vector<4x128xf32> to vector<1x128xf32>
    %19 = vector.extract_strided_slice %15 {offsets = [3, 0], sizes = [1, 128], strides = [1, 1]} : vector<4x128xf32> to vector<1x128xf32>
    %cst_11 = arith.constant 1.000000e+00 : f32
    %20 = vector.broadcast %cst_11 : f32 to vector<128x128xf32>
    %21 = arith.mulf %20, %0 : vector<128x128xf32>
    %22 = vector.extract_strided_slice %8 {offsets = [0, 0], sizes = [128, 128], strides = [1, 1]} : vector<384x128xf32> to vector<128x128xf32>
    %23 = arith.addf %21, %22 : vector<128x128xf32>
    %c0_12 = arith.constant 0 : index
    %c0_13 = arith.constant 0 : index
    %c0_14 = arith.constant 0 : index
    %24 = vector.load %arg4[%c0_12, %c0_13, %c0_14] : memref<3x128x128xf32, #tpu.memory_space<vmem>>, vector<1x128x128xf32>
    %25 = vector.shape_cast %24 : vector<1x128x128xf32> to vector<128x128xf32>
    %cst_15 = arith.constant dense<0.000000e+00> : vector<128x128xf32>
    %26 = tpu.matmul %23, %25, %cst_15 {dimension_numbers = #tpu.dot_dimension_numbers<[1], [0], [0], [1], [0, 0, 1, 1], [], []>} : vector<128x128xf32>, vector<128x128xf32>, vector<128x128xf32> -> vector<128x128xf32>
    %27 = vector.broadcast %16 : vector<1x128xf32> to vector<128x128xf32>
    %28 = arith.addf %26, %27 : vector<128x128xf32>
    %29 = vector.broadcast %13 : vector<128x1xf32> to vector<128x128xf32>
    %30 = arith.mulf %28, %29 : vector<128x128xf32>
    %cst_16 = arith.constant dense<0.000000e+00> : vector<128xf32>
    %31 = vector.multi_reduction <add>, %30, %cst_16 [0] : vector<128x128xf32> to vector<128xf32>
    %32 = vector.shape_cast %31 : vector<128xf32> to vector<1x128xf32>
    %cst_17 = arith.constant 3.125000e-02 : f32
    %33 = vector.broadcast %cst_17 : f32 to vector<1x128xf32>
    %34 = arith.mulf %32, %33 : vector<1x128xf32>
    %35 = vector.broadcast %34 : vector<1x128xf32> to vector<128x128xf32>
    %36 = arith.subf %28, %35 : vector<128x128xf32>
    %37 = arith.mulf %36, %36 : vector<128x128xf32>
    %38 = vector.broadcast %13 : vector<128x1xf32> to vector<128x128xf32>
    %39 = arith.mulf %37, %38 : vector<128x128xf32>
    %cst_18 = arith.constant dense<0.000000e+00> : vector<128xf32>
    %40 = vector.multi_reduction <add>, %39, %cst_18 [0] : vector<128x128xf32> to vector<128xf32>
    %41 = vector.shape_cast %40 : vector<128xf32> to vector<1x128xf32>
    %cst_19 = arith.constant 3.125000e-02 : f32
    %42 = vector.broadcast %cst_19 : f32 to vector<1x128xf32>
    %43 = arith.mulf %41, %42 : vector<1x128xf32>
    %cst_20 = arith.constant 9.99999974E-6 : f32
    %44 = vector.broadcast %cst_20 : f32 to vector<1x128xf32>
    %45 = arith.addf %43, %44 : vector<1x128xf32>
    %46 = math.rsqrt %45 : vector<1x128xf32>
    %47 = vector.broadcast %46 : vector<1x128xf32> to vector<128x128xf32>
    %48 = arith.mulf %36, %47 : vector<128x128xf32>
    %49 = vector.broadcast %17 : vector<1x128xf32> to vector<128x128xf32>
    %50 = arith.mulf %48, %49 : vector<128x128xf32>
    %51 = vector.broadcast %18 : vector<1x128xf32> to vector<128x128xf32>
    %52 = arith.addf %50, %51 : vector<128x128xf32>
    %cst_21 = arith.constant 0.000000e+00 : f32
    %53 = vector.broadcast %cst_21 : f32 to vector<128x128xf32>
    %54 = arith.maximumf %52, %53 : vector<128x128xf32>
    %c0_22 = arith.constant 0 : index
    %c0_23 = arith.constant 0 : index
    %c0_24 = arith.constant 0 : index
    %55 = vector.load %arg6[%c0_22, %c0_23, %c0_24] : memref<3x128x128xf32, #tpu.memory_space<vmem>>, vector<1x128x128xf32>
    %56 = vector.shape_cast %55 : vector<1x128x128xf32> to vector<128x128xf32>
    %cst_25 = arith.constant dense<0.000000e+00> : vector<128x128xf32>
    %57 = tpu.matmul %54, %56, %cst_25 {dimension_numbers = #tpu.dot_dimension_numbers<[1], [0], [0], [1], [0, 0, 1, 1], [], []>} : vector<128x128xf32>, vector<128x128xf32>, vector<128x128xf32> -> vector<128x128xf32>
    %58 = arith.addf %5, %57 : vector<128x128xf32>
    %59 = vector.broadcast %19 : vector<1x128xf32> to vector<128x128xf32>
    %60 = arith.addf %58, %59 : vector<128x128xf32>
    %c1 = arith.constant 1 : index
    %c0_26 = arith.constant 0 : index
    %c0_27 = arith.constant 0 : index
    %61 = vector.load %arg5[%c1, %c0_26, %c0_27] : memref<3x4x128xf32, #tpu.memory_space<vmem>>, vector<1x4x128xf32>
    %62 = vector.shape_cast %61 : vector<1x4x128xf32> to vector<4x128xf32>
    %63 = vector.extract_strided_slice %62 {offsets = [0, 0], sizes = [1, 128], strides = [1, 1]} : vector<4x128xf32> to vector<1x128xf32>
    %64 = vector.extract_strided_slice %62 {offsets = [1, 0], sizes = [1, 128], strides = [1, 1]} : vector<4x128xf32> to vector<1x128xf32>
    %65 = vector.extract_strided_slice %62 {offsets = [2, 0], sizes = [1, 128], strides = [1, 1]} : vector<4x128xf32> to vector<1x128xf32>
    %66 = vector.extract_strided_slice %62 {offsets = [3, 0], sizes = [1, 128], strides = [1, 1]} : vector<4x128xf32> to vector<1x128xf32>
    %cst_28 = arith.constant 1.000000e+00 : f32
    %67 = vector.broadcast %cst_28 : f32 to vector<128x128xf32>
    %68 = arith.mulf %67, %0 : vector<128x128xf32>
    %69 = vector.extract_strided_slice %8 {offsets = [128, 0], sizes = [128, 128], strides = [1, 1]} : vector<384x128xf32> to vector<128x128xf32>
    %70 = arith.addf %68, %69 : vector<128x128xf32>
    %c1_29 = arith.constant 1 : index
    %c0_30 = arith.constant 0 : index
    %c0_31 = arith.constant 0 : index
    %71 = vector.load %arg4[%c1_29, %c0_30, %c0_31] : memref<3x128x128xf32, #tpu.memory_space<vmem>>, vector<1x128x128xf32>
    %72 = vector.shape_cast %71 : vector<1x128x128xf32> to vector<128x128xf32>
    %cst_32 = arith.constant dense<0.000000e+00> : vector<128x128xf32>
    %73 = tpu.matmul %70, %72, %cst_32 {dimension_numbers = #tpu.dot_dimension_numbers<[1], [0], [0], [1], [0, 0, 1, 1], [], []>} : vector<128x128xf32>, vector<128x128xf32>, vector<128x128xf32> -> vector<128x128xf32>
    %74 = vector.broadcast %63 : vector<1x128xf32> to vector<128x128xf32>
    %75 = arith.addf %73, %74 : vector<128x128xf32>
    %76 = vector.broadcast %13 : vector<128x1xf32> to vector<128x128xf32>
    %77 = arith.mulf %75, %76 : vector<128x128xf32>
    %cst_33 = arith.constant dense<0.000000e+00> : vector<128xf32>
    %78 = vector.multi_reduction <add>, %77, %cst_33 [0] : vector<128x128xf32> to vector<128xf32>
    %79 = vector.shape_cast %78 : vector<128xf32> to vector<1x128xf32>
    %cst_34 = arith.constant 3.125000e-02 : f32
    %80 = vector.broadcast %cst_34 : f32 to vector<1x128xf32>
    %81 = arith.mulf %79, %80 : vector<1x128xf32>
    %82 = vector.broadcast %81 : vector<1x128xf32> to vector<128x128xf32>
    %83 = arith.subf %75, %82 : vector<128x128xf32>
    %84 = arith.mulf %83, %83 : vector<128x128xf32>
    %85 = vector.broadcast %13 : vector<128x1xf32> to vector<128x128xf32>
    %86 = arith.mulf %84, %85 : vector<128x128xf32>
    %cst_35 = arith.constant dense<0.000000e+00> : vector<128xf32>
    %87 = vector.multi_reduction <add>, %86, %cst_35 [0] : vector<128x128xf32> to vector<128xf32>
    %88 = vector.shape_cast %87 : vector<128xf32> to vector<1x128xf32>
    %cst_36 = arith.constant 3.125000e-02 : f32
    %89 = vector.broadcast %cst_36 : f32 to vector<1x128xf32>
    %90 = arith.mulf %88, %89 : vector<1x128xf32>
    %cst_37 = arith.constant 9.99999974E-6 : f32
    %91 = vector.broadcast %cst_37 : f32 to vector<1x128xf32>
    %92 = arith.addf %90, %91 : vector<1x128xf32>
    %93 = math.rsqrt %92 : vector<1x128xf32>
    %94 = vector.broadcast %93 : vector<1x128xf32> to vector<128x128xf32>
    %95 = arith.mulf %83, %94 : vector<128x128xf32>
    %96 = vector.broadcast %64 : vector<1x128xf32> to vector<128x128xf32>
    %97 = arith.mulf %95, %96 : vector<128x128xf32>
    %98 = vector.broadcast %65 : vector<1x128xf32> to vector<128x128xf32>
    %99 = arith.addf %97, %98 : vector<128x128xf32>
    %cst_38 = arith.constant 0.000000e+00 : f32
    %100 = vector.broadcast %cst_38 : f32 to vector<128x128xf32>
    %101 = arith.maximumf %99, %100 : vector<128x128xf32>
    %c1_39 = arith.constant 1 : index
    %c0_40 = arith.constant 0 : index
    %c0_41 = arith.constant 0 : index
    %102 = vector.load %arg6[%c1_39, %c0_40, %c0_41] : memref<3x128x128xf32, #tpu.memory_space<vmem>>, vector<1x128x128xf32>
    %103 = vector.shape_cast %102 : vector<1x128x128xf32> to vector<128x128xf32>
    %cst_42 = arith.constant dense<0.000000e+00> : vector<128x128xf32>
    %104 = tpu.matmul %101, %103, %cst_42 {dimension_numbers = #tpu.dot_dimension_numbers<[1], [0], [0], [1], [0, 0, 1, 1], [], []>} : vector<128x128xf32>, vector<128x128xf32>, vector<128x128xf32> -> vector<128x128xf32>
    %105 = arith.addf %60, %104 : vector<128x128xf32>
    %106 = vector.broadcast %66 : vector<1x128xf32> to vector<128x128xf32>
    %107 = arith.addf %105, %106 : vector<128x128xf32>
    %c2 = arith.constant 2 : index
    %c0_43 = arith.constant 0 : index
    %c0_44 = arith.constant 0 : index
    %108 = vector.load %arg5[%c2, %c0_43, %c0_44] : memref<3x4x128xf32, #tpu.memory_space<vmem>>, vector<1x4x128xf32>
    %109 = vector.shape_cast %108 : vector<1x4x128xf32> to vector<4x128xf32>
    %110 = vector.extract_strided_slice %109 {offsets = [0, 0], sizes = [1, 128], strides = [1, 1]} : vector<4x128xf32> to vector<1x128xf32>
    %111 = vector.extract_strided_slice %109 {offsets = [1, 0], sizes = [1, 128], strides = [1, 1]} : vector<4x128xf32> to vector<1x128xf32>
    %112 = vector.extract_strided_slice %109 {offsets = [2, 0], sizes = [1, 128], strides = [1, 1]} : vector<4x128xf32> to vector<1x128xf32>
    %113 = vector.extract_strided_slice %109 {offsets = [3, 0], sizes = [1, 128], strides = [1, 1]} : vector<4x128xf32> to vector<1x128xf32>
    %cst_45 = arith.constant 1.000000e+00 : f32
    %114 = vector.broadcast %cst_45 : f32 to vector<128x128xf32>
    %115 = arith.mulf %114, %0 : vector<128x128xf32>
    %116 = vector.extract_strided_slice %8 {offsets = [256, 0], sizes = [128, 128], strides = [1, 1]} : vector<384x128xf32> to vector<128x128xf32>
    %117 = arith.addf %115, %116 : vector<128x128xf32>
    %c2_46 = arith.constant 2 : index
    %c0_47 = arith.constant 0 : index
    %c0_48 = arith.constant 0 : index
    %118 = vector.load %arg4[%c2_46, %c0_47, %c0_48] : memref<3x128x128xf32, #tpu.memory_space<vmem>>, vector<1x128x128xf32>
    %119 = vector.shape_cast %118 : vector<1x128x128xf32> to vector<128x128xf32>
    %cst_49 = arith.constant dense<0.000000e+00> : vector<128x128xf32>
    %120 = tpu.matmul %117, %119, %cst_49 {dimension_numbers = #tpu.dot_dimension_numbers<[1], [0], [0], [1], [0, 0, 1, 1], [], []>} : vector<128x128xf32>, vector<128x128xf32>, vector<128x128xf32> -> vector<128x128xf32>
    %121 = vector.broadcast %110 : vector<1x128xf32> to vector<128x128xf32>
    %122 = arith.addf %120, %121 : vector<128x128xf32>
    %123 = vector.broadcast %13 : vector<128x1xf32> to vector<128x128xf32>
    %124 = arith.mulf %122, %123 : vector<128x128xf32>
    %cst_50 = arith.constant dense<0.000000e+00> : vector<128xf32>
    %125 = vector.multi_reduction <add>, %124, %cst_50 [0] : vector<128x128xf32> to vector<128xf32>
    %126 = vector.shape_cast %125 : vector<128xf32> to vector<1x128xf32>
    %cst_51 = arith.constant 3.125000e-02 : f32
    %127 = vector.broadcast %cst_51 : f32 to vector<1x128xf32>
    %128 = arith.mulf %126, %127 : vector<1x128xf32>
    %129 = vector.broadcast %128 : vector<1x128xf32> to vector<128x128xf32>
    %130 = arith.subf %122, %129 : vector<128x128xf32>
    %131 = arith.mulf %130, %130 : vector<128x128xf32>
    %132 = vector.broadcast %13 : vector<128x1xf32> to vector<128x128xf32>
    %133 = arith.mulf %131, %132 : vector<128x128xf32>
    %cst_52 = arith.constant dense<0.000000e+00> : vector<128xf32>
    %134 = vector.multi_reduction <add>, %133, %cst_52 [0] : vector<128x128xf32> to vector<128xf32>
    %135 = vector.shape_cast %134 : vector<128xf32> to vector<1x128xf32>
    %cst_53 = arith.constant 3.125000e-02 : f32
    %136 = vector.broadcast %cst_53 : f32 to vector<1x128xf32>
    %137 = arith.mulf %135, %136 : vector<1x128xf32>
    %cst_54 = arith.constant 9.99999974E-6 : f32
    %138 = vector.broadcast %cst_54 : f32 to vector<1x128xf32>
    %139 = arith.addf %137, %138 : vector<1x128xf32>
    %140 = math.rsqrt %139 : vector<1x128xf32>
    %141 = vector.broadcast %140 : vector<1x128xf32> to vector<128x128xf32>
    %142 = arith.mulf %130, %141 : vector<128x128xf32>
    %143 = vector.broadcast %111 : vector<1x128xf32> to vector<128x128xf32>
    %144 = arith.mulf %142, %143 : vector<128x128xf32>
    %145 = vector.broadcast %112 : vector<1x128xf32> to vector<128x128xf32>
    %146 = arith.addf %144, %145 : vector<128x128xf32>
    %cst_55 = arith.constant 0.000000e+00 : f32
    %147 = vector.broadcast %cst_55 : f32 to vector<128x128xf32>
    %148 = arith.maximumf %146, %147 : vector<128x128xf32>
    %c2_56 = arith.constant 2 : index
    %c0_57 = arith.constant 0 : index
    %c0_58 = arith.constant 0 : index
    %149 = vector.load %arg6[%c2_56, %c0_57, %c0_58] : memref<3x128x128xf32, #tpu.memory_space<vmem>>, vector<1x128x128xf32>
    %150 = vector.shape_cast %149 : vector<1x128x128xf32> to vector<128x128xf32>
    %cst_59 = arith.constant dense<0.000000e+00> : vector<128x128xf32>
    %151 = tpu.matmul %148, %150, %cst_59 {dimension_numbers = #tpu.dot_dimension_numbers<[1], [0], [0], [1], [0, 0, 1, 1], [], []>} : vector<128x128xf32>, vector<128x128xf32>, vector<128x128xf32> -> vector<128x128xf32>
    %152 = arith.addf %107, %151 : vector<128x128xf32>
    %153 = vector.broadcast %113 : vector<1x128xf32> to vector<128x128xf32>
    %154 = arith.addf %152, %153 : vector<128x128xf32>
    %c0_60 = arith.constant 0 : index
    %c0_61 = arith.constant 0 : index
    %155 = vector.load %arg7[%c0_60, %c0_61] : memref<128x128xf32, #tpu.memory_space<vmem>>, vector<128x128xf32>
    tpu.vector_store %arg7[%c0_60, %c0_61], %154 {strides = array<i32>} : memref<128x128xf32, #tpu.memory_space<vmem>>, vector<128x128xf32>,
    return
  }
}

</mosaic_0001>

<llo_original>
// kernel: rgin_forward.1
$region0: #{rgin_forward.1}
  #allocation0 [shape = 'u32[]', space=smem, size = 0x4, offset = 0x4, fixed_abs, tag = 'smem constant byte address 0x4 - core index']
  #allocation1 [shape = 'u32[144,128]{1,0:T(1,128)}', space=vmem, size = 0x12000, scoped, tag = 'internal scratch']
  %s0 = inlined_call_operand.vmem [shape: bf16[384,128], index: 0, kind: input, shape index: {}]
  %s1 = inlined_call_operand.vmem [shape: f32[128,128], index: 1, kind: input, shape index: {}]
  %s2 = inlined_call_operand.vmem [shape: f32[128,128], index: 2, kind: input, shape index: {}]
  %s3 = inlined_call_operand.vmem [shape: f32[1,128], index: 3, kind: input, shape index: {}]
  %s4 = inlined_call_operand.vmem [shape: f32[3,128,128], index: 4, kind: input, shape index: {}]
  %s5 = inlined_call_operand.vmem [shape: f32[3,4,128], index: 5, kind: input, shape index: {}]
  %s6 = inlined_call_operand.vmem [shape: f32[3,128,128], index: 6, kind: input, shape index: {}]
  %s7 = inlined_call_operand.vmem [shape: f32[128,128], index: 7, kind: output, shape index: {}]
  %s8 = sld [smem:[#allocation0]]
  $region38: #{rgin_forward.1} parent=0
    _
  %s10 = ssub.s32 1, %s8
  %s11 = scalar_select 0, %s10, %s8
  // Predicated region
  $region2: #{rgin_forward.1} parent=0 // pred_check
    _
  $region3: #{rgin_forward.1} parent=0 // pred_check_branch
    %13 = sbr.rel (0) target = $region5
  $region4: #{rgin_forward.1} parent=0 // pred_region
    _
  $region5: #{rgin_forward.1} parent=0 // pred_fallthru
    _
  // Predicated region
  $region6: #{rgin_forward.1} parent=0 // pred_check
    _
  $region7: #{rgin_forward.1} parent=0 // pred_check_branch
    %15 = sbr.rel (0) target = $region9
  $region8: #{rgin_forward.1} parent=0 // pred_region
    _
  $region9: #{rgin_forward.1} parent=0 // pred_fallthru
    _
  // Predicated region
  $region10: #{rgin_forward.1} parent=0 // pred_check
    _
  $region11: #{rgin_forward.1} parent=0 // pred_check_branch
    %17 = sbr.rel (0) target = $region13
  $region12: #{rgin_forward.1} parent=0 // pred_region
    _
  $region13: #{rgin_forward.1} parent=0 // pred_fallthru
    _
  // Predicated region
  $region14: #{rgin_forward.1} parent=0 // pred_check
    _
  $region15: #{rgin_forward.1} parent=0 // pred_check_branch
    %19 = sbr.rel (0) target = $region17
  $region16: #{rgin_forward.1} parent=0 // pred_region
    _
  $region17: #{rgin_forward.1} parent=0 // pred_fallthru
    _
  // Predicated region
  $region18: #{rgin_forward.1} parent=0 // pred_check
    _
  $region19: #{rgin_forward.1} parent=0 // pred_check_branch
    %21 = sbr.rel (0) target = $region21
  $region20: #{rgin_forward.1} parent=0 // pred_region
    _
  $region21: #{rgin_forward.1} parent=0 // pred_fallthru
    _
  // Predicated region
  $region22: #{rgin_forward.1} parent=0 // pred_check
    _
  $region23: #{rgin_forward.1} parent=0 // pred_check_branch
    %23 = sbr.rel (0) target = $region25
  $region24: #{rgin_forward.1} parent=0 // pred_region
    _
  $region25: #{rgin_forward.1} parent=0 // pred_fallthru
    _
  // Predicated region
  $region26: #{rgin_forward.1} parent=0 // pred_check
    _
  $region27: #{rgin_forward.1} parent=0 // pred_check_branch
    %25 = sbr.rel (0) target = $region29
  $region28: #{rgin_forward.1} parent=0 // pred_region
    _
  $region29: #{rgin_forward.1} parent=0 // pred_fallthru
    _
  %v26 = vld [vmem:[%s1] sm:$0xff]
  %v27 = vld [vmem:[%s1 + $0x8] sm:$0xff]
  %v28 = vld [vmem:[%s1 + $0x10] sm:$0xff]
  %v29 = vld [vmem:[%s1 + $0x18] sm:$0xff]
  %v30 = vld [vmem:[%s1 + $0x20] sm:$0xff]
  %v31 = vld [vmem:[%s1 + $0x28] sm:$0xff]
  %v32 = vld [vmem:[%s1 + $0x30] sm:$0xff]
  %v33 = vld [vmem:[%s1 + $0x38] sm:$0xff]
  %v34 = vld [vmem:[%s1 + $0x40] sm:$0xff]
  %v35 = vld [vmem:[%s1 + $0x48] sm:$0xff]
  %v36 = vld [vmem:[%s1 + $0x50] sm:$0xff]
  %v37 = vld [vmem:[%s1 + $0x58] sm:$0xff]
  %v38 = vld [vmem:[%s1 + $0x60] sm:$0xff]
  %v39 = vld [vmem:[%s1 + $0x68] sm:$0xff]
  %v40 = vld [vmem:[%s1 + $0x70] sm:$0xff]
  %v41 = vld [vmem:[%s1 + $0x78] sm:$0xff]
  %v42 = vld [vmem:[%s2] sm:$0xff]
  %v43 = vld [vmem:[%s2 + $0x8] sm:$0xff]
  %v44 = vld [vmem:[%s2 + $0x10] sm:$0xff]
  %v45 = vld [vmem:[%s2 + $0x18] sm:$0xff]
  %v46 = vld [vmem:[%s2 + $0x20] sm:$0xff]
  %v47 = vld [vmem:[%s2 + $0x28] sm:$0xff]
  %v48 = vld [vmem:[%s2 + $0x30] sm:$0xff]
  %v49 = vld [vmem:[%s2 + $0x38] sm:$0xff]
  %v50 = vld [vmem:[%s2 + $0x40] sm:$0xff]
  %v51 = vld [vmem:[%s2 + $0x48] sm:$0xff]
  %v52 = vld [vmem:[%s2 + $0x50] sm:$0xff]
  %v53 = vld [vmem:[%s2 + $0x58] sm:$0xff]
  %v54 = vld [vmem:[%s2 + $0x60] sm:$0xff]
  %v55 = vld [vmem:[%s2 + $0x68] sm:$0xff]
  %v56 = vld [vmem:[%s2 + $0x70] sm:$0xff]
  %v57 = vld [vmem:[%s2 + $0x78] sm:$0xff]
  %v58 = vld [vmem:[%s3] sm:$0x1]
  %v60 = vlaneseq
  %v61 = vshrl.u32 %v60, 7
  %v62 = vsub.s32 0, %v61
  %v63 = vrot.slane %v58, %v62
  %65 = vmatprep.subr.mxu0 0.0
  %66 = vmatpush1.msra.mxu0 %v42
  %67 = vmatprep.subr.mxu0 0.0
  %68 = vmatpush1.msra.mxu0 %v43
  %69 = vmatprep.subr.mxu0 0.0
  %70 = vmatpush1.msra.mxu0 %v44
  %71 = vmatprep.subr.mxu0 0.0
  %72 = vmatpush1.msra.mxu0 %v45
  %73 = vmatprep.subr.mxu0 0.0
  %74 = vmatpush1.msra.mxu0 %v46
  %75 = vmatprep.subr.mxu0 0.0
  %76 = vmatpush1.msra.mxu0 %v47
  %77 = vmatprep.subr.mxu0 0.0
  %78 = vmatpush1.msra.mxu0 %v48
  %79 = vmatprep.subr.mxu0 0.0
  %80 = vmatpush1.msra.mxu0 %v49
  %81 = vmatprep.subr.mxu0 0.0
  %82 = vmatpush1.msra.mxu0 %v50
  %83 = vmatprep.subr.mxu0 0.0
  %84 = vmatpush1.msra.mxu0 %v51
  %85 = vmatprep.subr.mxu0 0.0
  %86 = vmatpush1.msra.mxu0 %v52
  %87 = vmatprep.subr.mxu0 0.0
  %88 = vmatpush1.msra.mxu0 %v53
  %89 = vmatprep.subr.mxu0 0.0
  %90 = vmatpush1.msra.mxu0 %v54
  %91 = vmatprep.subr.mxu0 0.0
  %92 = vmatpush1.msra.mxu0 %v55
  %93 = vmatprep.subr.mxu0 0.0
  %94 = vmatpush1.msra.mxu0 %v56
  %95 = vmatprep.subr.mxu0 0.0
  %96 = vmatpush1.msra.mxu0 %v57
  %97 = vmatprep.subr.mxu0 0.0
  %98 = vmatpush1.msra.mxu0 0.0
  %99 = vmatprep.subr.mxu0 0.0
  %100 = vmatpush1.msra.mxu0 0.0
  %101 = vmatprep.subr.mxu0 0.0
  %102 = vmatpush1.msra.mxu0 0.0
  %103 = vmatprep.subr.mxu0 0.0
  %104 = vmatpush1.msra.mxu0 0.0
  %105 = vmatprep.subr.mxu0 0.0
  %106 = vmatpush1.msra.mxu0 0.0
  %107 = vmatprep.subr.mxu0 0.0
  %108 = vmatpush1.msra.mxu0 0.0
  %109 = vmatprep.subr.mxu0 0.0
  %110 = vmatpush1.msra.mxu0 0.0
  %111 = vmatprep.subr.mxu0 0.0
  %112 = vmatpush1.msra.mxu0 0.0
  %113 = vmatprep.subr.mxu0 0.0
  %114 = vmatpush1.msra.mxu0 0.0
  %115 = vmatprep.subr.mxu0 0.0
  %116 = vmatpush1.msra.mxu0 0.0
  %117 = vmatprep.subr.mxu0 0.0
  %118 = vmatpush1.msra.mxu0 0.0
  %119 = vmatprep.subr.mxu0 0.0
  %120 = vmatpush1.msra.mxu0 0.0
  %121 = vmatprep.subr.mxu0 0.0
  %122 = vmatpush1.msra.mxu0 0.0
  %123 = vmatprep.subr.mxu0 0.0
  %124 = vmatpush1.msra.mxu0 0.0
  %125 = vmatprep.subr.mxu0 0.0
  %126 = vmatpush1.msra.mxu0 0.0
  %127 = vmatprep.subr.mxu0 0.0
  %128 = vmatpush1.msra.mxu0 0.0
  %129 = vmatprep.mubr.f32.mxu0 0.0
  %130 = vmatmul.mubr.f32.gmra.mrb[0].mxu0 %v26
  %v131 = vpop.f32.mrb[0].mxu0
  %v132 = vadd.f32 %v63, %v131
  %v133 = vpop.f32.mrb[0].mxu0
  %134 = vmatprep.mubr.f32.mxu0 0.0
  %135 = vmatmul.mubr.f32.gmra.mrb[0].mxu0 %v27
  %v136 = vpop.f32.mrb[0].mxu0
  %v137 = vadd.f32 %v63, %v136
  %v138 = vpop.f32.mrb[0].mxu0
  %139 = vmatprep.mubr.f32.mxu0 0.0
  %140 = vmatmul.mubr.f32.gmra.mrb[0].mxu0 %v28
  %v141 = vpop.f32.mrb[0].mxu0
  %v142 = vadd.f32 %v63, %v141
  %v143 = vpop.f32.mrb[0].mxu0
  %144 = vmatprep.mubr.f32.mxu0 0.0
  %145 = vmatmul.mubr.f32.gmra.mrb[0].mxu0 %v29
  %v146 = vpop.f32.mrb[0].mxu0
  %v147 = vadd.f32 %v63, %v146
  %v148 = vpop.f32.mrb[0].mxu0
  %149 = vmatprep.mubr.f32.mxu0 0.0
  %150 = vmatmul.mubr.f32.gmra.mrb[0].mxu0 %v30
  %v151 = vpop.f32.mrb[0].mxu0
  %v152 = vadd.f32 %v63, %v151
  %v153 = vpop.f32.mrb[0].mxu0
  %154 = vmatprep.mubr.f32.mxu0 0.0
  %155 = vmatmul.mubr.f32.gmra.mrb[0].mxu0 %v31
  %v156 = vpop.f32.mrb[0].mxu0
  %v157 = vadd.f32 %v63, %v156
  %v158 = vpop.f32.mrb[0].mxu0
  %159 = vmatprep.mubr.f32.mxu0 0.0
  %160 = vmatmul.mubr.f32.gmra.mrb[0].mxu0 %v32
  %v161 = vpop.f32.mrb[0].mxu0
  %v162 = vadd.f32 %v63, %v161
  %v163 = vpop.f32.mrb[0].mxu0
  %164 = vmatprep.mubr.f32.mxu0 0.0
  %165 = vmatmul.mubr.f32.gmra.mrb[0].mxu0 %v33
  %v166 = vpop.f32.mrb[0].mxu0
  %v167 = vadd.f32 %v63, %v166
  %v168 = vpop.f32.mrb[0].mxu0
  %169 = vmatprep.mubr.f32.mxu0 0.0
  %170 = vmatmul.mubr.f32.gmra.mrb[0].mxu0 %v34
  %v171 = vpop.f32.mrb[0].mxu0
  %v172 = vadd.f32 %v63, %v171
  %v173 = vpop.f32.mrb[0].mxu0
  %174 = vmatprep.mubr.f32.mxu0 0.0
  %175 = vmatmul.mubr.f32.gmra.mrb[0].mxu0 %v35
  %v176 = vpop.f32.mrb[0].mxu0
  %v177 = vadd.f32 %v63, %v176
  %v178 = vpop.f32.mrb[0].mxu0
  %179 = vmatprep.mubr.f32.mxu0 0.0
  %180 = vmatmul.mubr.f32.gmra.mrb[0].mxu0 %v36
  %v181 = vpop.f32.mrb[0].mxu0
  %v182 = vadd.f32 %v63, %v181
  %v183 = vpop.f32.mrb[0].mxu0
  %184 = vmatprep.mubr.f32.mxu0 0.0
  %185 = vmatmul.mubr.f32.gmra.mrb[0].mxu0 %v37
  %v186 = vpop.f32.mrb[0].mxu0
  %v187 = vadd.f32 %v63, %v186
  %v188 = vpop.f32.mrb[0].mxu0
  %189 = vmatprep.mubr.f32.mxu0 0.0
  %190 = vmatmul.mubr.f32.gmra.mrb[0].mxu0 %v38
  %v191 = vpop.f32.mrb[0].mxu0
  %v192 = vadd.f32 %v63, %v191
  %v193 = vpop.f32.mrb[0].mxu0
  %194 = vmatprep.mubr.f32.mxu0 0.0
  %195 = vmatmul.mubr.f32.gmra.mrb[0].mxu0 %v39
  %v196 = vpop.f32.mrb[0].mxu0
  %v197 = vadd.f32 %v63, %v196
  %v198 = vpop.f32.mrb[0].mxu0
  %199 = vmatprep.mubr.f32.mxu0 0.0
  %200 = vmatmul.mubr.f32.gmra.mrb[0].mxu0 %v40
  %v201 = vpop.f32.mrb[0].mxu0
  %v202 = vadd.f32 %v63, %v201
  %v203 = vpop.f32.mrb[0].mxu0
  %204 = vmatprep.mubr.f32.mxu0 0.0
  %205 = vmatmul.mubr.f32.gmra.mrb[0].mxu0 %v41
  %v206 = vpop.f32.mrb[0].mxu0
  %v207 = vadd.f32 %v63, %v206
  %v208 = vpop.f32.mrb[0].mxu0
  %209 = vdwg.mxu0
  %v210 = vld [vmem:[%s0] sm:$0xf]
  %v211 = vld [vmem:[%s0 + $0x4] sm:$0xf]
  %v212 = vld [vmem:[%s0 + $0x8] sm:$0xf]
  %v213 = vld [vmem:[%s0 + $0xc] sm:$0xf]
  %v214 = vld [vmem:[%s0 + $0x10] sm:$0xf]
  %v215 = vld [vmem:[%s0 + $0x14] sm:$0xf]
  %v216 = vld [vmem:[%s0 + $0x18] sm:$0xf]
  %v217 = vld [vmem:[%s0 + $0x1c] sm:$0xf]
  %v218 = vld [vmem:[%s0 + $0x20] sm:$0xf]
  %v219 = vld [vmem:[%s0 + $0x24] sm:$0xf]
  %v220 = vld [vmem:[%s0 + $0x28] sm:$0xf]
  %v221 = vld [vmem:[%s0 + $0x2c] sm:$0xf]
  %v222 = vld [vmem:[%s0 + $0x30] sm:$0xf]
  %v223 = vld [vmem:[%s0 + $0x34] sm:$0xf]
  %v224 = vld [vmem:[%s0 + $0x38] sm:$0xf]
  %v225 = vld [vmem:[%s0 + $0x3c] sm:$0xf]
  %v226 = vld [vmem:[%s0 + $0x40] sm:$0xf]
  %v227 = vld [vmem:[%s0 + $0x44] sm:$0xf]
  %v228 = vld [vmem:[%s0 + $0x48] sm:$0xf]
  %v229 = vld [vmem:[%s0 + $0x4c] sm:$0xf]
  %v230 = vld [vmem:[%s0 + $0x50] sm:$0xf]
  %v231 = vld [vmem:[%s0 + $0x54] sm:$0xf]
  %v232 = vld [vmem:[%s0 + $0x58] sm:$0xf]
  %v233 = vld [vmem:[%s0 + $0x5c] sm:$0xf]
  %v234 = vld [vmem:[%s0 + $0x60] sm:$0xf]
  %v235 = vld [vmem:[%s0 + $0x64] sm:$0xf]
  %v236 = vld [vmem:[%s0 + $0x68] sm:$0xf]
  %v237 = vld [vmem:[%s0 + $0x6c] sm:$0xf]
  %v238 = vld [vmem:[%s0 + $0x70] sm:$0xf]
  %v239 = vld [vmem:[%s0 + $0x74] sm:$0xf]
  %v240 = vld [vmem:[%s0 + $0x78] sm:$0xf]
  %v241 = vld [vmem:[%s0 + $0x7c] sm:$0xf]
  %v242 = vld [vmem:[%s0 + $0x80] sm:$0xf]
  %v243 = vld [vmem:[%s0 + $0x84] sm:$0xf]
  %v244 = vld [vmem:[%s0 + $0x88] sm:$0xf]
  %v245 = vld [vmem:[%s0 + $0x8c] sm:$0xf]
  %v246 = vld [vmem:[%s0 + $0x90] sm:$0xf]
  %v247 = vld [vmem:[%s0 + $0x94] sm:$0xf]
  %v248 = vld [vmem:[%s0 + $0x98] sm:$0xf]
  %v249 = vld [vmem:[%s0 + $0x9c] sm:$0xf]
  %v250 = vld [vmem:[%s0 + $0xa0] sm:$0xf]
  %v251 = vld [vmem:[%s0 + $0xa4] sm:$0xf]
  %v252 = vld [vmem:[%s0 + $0xa8] sm:$0xf]
  %v253 = vld [vmem:[%s0 + $0xac] sm:$0xf]
  %v254 = vld [vmem:[%s0 + $0xb0] sm:$0xf]
  %v255 = vld [vmem:[%s0 + $0xb4] sm:$0xf]
  %v256 = vld [vmem:[%s0 + $0xb8] sm:$0xf]
  %v257 = vld [vmem:[%s0 + $0xbc] sm:$0xf]
  %v258 = vunpack.c.l.bf16 %v210
  %v259 = vunpack.c.l.bf16 %v211
  %v260 = vunpack.c.l.bf16 %v212
  %v261 = vunpack.c.l.bf16 %v213
  %v262 = vunpack.c.l.bf16 %v214
  %v263 = vunpack.c.l.bf16 %v215
  %v264 = vunpack.c.l.bf16 %v216
  %v265 = vunpack.c.l.bf16 %v217
  %v266 = vunpack.c.l.bf16 %v218
  %v267 = vunpack.c.l.bf16 %v219
  %v268 = vunpack.c.l.bf16 %v220
  %v269 = vunpack.c.l.bf16 %v221
  %v270 = vunpack.c.l.bf16 %v222
  %v271 = vunpack.c.l.bf16 %v223
  %v272 = vunpack.c.l.bf16 %v224
  %v273 = vunpack.c.l.bf16 %v225
  %v274 = vunpack.c.l.bf16 %v226
  %v275 = vunpack.c.l.bf16 %v227
  %v276 = vunpack.c.l.bf16 %v228
  %v277 = vunpack.c.l.bf16 %v229
  %v278 = vunpack.c.l.bf16 %v230
  %v279 = vunpack.c.l.bf16 %v231
  %v280 = vunpack.c.l.bf16 %v232
  %v281 = vunpack.c.l.bf16 %v233
  %v282 = vunpack.c.l.bf16 %v234
  %v283 = vunpack.c.l.bf16 %v235
  %v284 = vunpack.c.l.bf16 %v236
  %v285 = vunpack.c.l.bf16 %v237
  %v286 = vunpack.c.l.bf16 %v238
  %v287 = vunpack.c.l.bf16 %v239
  %v288 = vunpack.c.l.bf16 %v240
  %v289 = vunpack.c.l.bf16 %v241
  %v290 = vunpack.c.l.bf16 %v242
  %v291 = vunpack.c.l.bf16 %v243
  %v292 = vunpack.c.l.bf16 %v244
  %v293 = vunpack.c.l.bf16 %v245
  %v294 = vunpack.c.l.bf16 %v246
  %v295 = vunpack.c.l.bf16 %v247
  %v296 = vunpack.c.l.bf16 %v248
  %v297 = vunpack.c.l.bf16 %v249
  %v298 = vunpack.c.l.bf16 %v250
  %v299 = vunpack.c.l.bf16 %v251
  %v300 = vunpack.c.l.bf16 %v252
  %v301 = vunpack.c.l.bf16 %v253
  %v302 = vunpack.c.l.bf16 %v254
  %v303 = vunpack.c.l.bf16 %v255
  %v304 = vunpack.c.l.bf16 %v256
  %v305 = vunpack.c.l.bf16 %v257
  %306 = vmatprep.subr.mxu0 0.0
  %307 = vmatpush1.msra.mxu0 %v26
  %308 = vmatprep.subr.mxu0 0.0
  %309 = vmatpush1.msra.mxu0 %v27
  %310 = vmatprep.subr.mxu0 0.0
  %311 = vmatpush1.msra.mxu0 %v28
  %312 = vmatprep.subr.mxu0 0.0
  %313 = vmatpush1.msra.mxu0 %v29
  %314 = vmatprep.subr.mxu0 0.0
  %315 = vmatpush1.msra.mxu0 %v30
  %316 = vmatprep.subr.mxu0 0.0
  %317 = vmatpush1.msra.mxu0 %v31
  %318 = vmatprep.subr.mxu0 0.0
  %319 = vmatpush1.msra.mxu0 %v32
  %320 = vmatprep.subr.mxu0 0.0
  %321 = vmatpush1.msra.mxu0 %v33
  %322 = vmatprep.subr.mxu0 0.0
  %323 = vmatpush1.msra.mxu0 %v34
  %324 = vmatprep.subr.mxu0 0.0
  %325 = vmatpush1.msra.mxu0 %v35
  %326 = vmatprep.subr.mxu0 0.0
  %327 = vmatpush1.msra.mxu0 %v36
  %328 = vmatprep.subr.mxu0 0.0
  %329 = vmatpush1.msra.mxu0 %v37
  %330 = vmatprep.subr.mxu0 0.0
  %331 = vmatpush1.msra.mxu0 %v38
  %332 = vmatprep.subr.mxu0 0.0
  %333 = vmatpush1.msra.mxu0 %v39
  %334 = vmatprep.subr.mxu0 0.0
  %335 = vmatpush1.msra.mxu0 %v40
  %336 = vmatprep.subr.mxu0 0.0
  %337 = vmatpush1.msra.mxu0 %v41
  %338 = vmatprep.subr.mxu0 0.0
  %339 = vmatpush1.msra.mxu0 0.0
  %340 = vmatprep.subr.mxu0 0.0
  %341 = vmatpush1.msra.mxu0 0.0
  %342 = vmatprep.subr.mxu0 0.0
  %343 = vmatpush1.msra.mxu0 0.0
  %344 = vmatprep.subr.mxu0 0.0
  %345 = vmatpush1.msra.mxu0 0.0
  %346 = vmatprep.subr.mxu0 0.0
  %347 = vmatpush1.msra.mxu0 0.0
  %348 = vmatprep.subr.mxu0 0.0
  %349 = vmatpush1.msra.mxu0 0.0
  %350 = vmatprep.subr.mxu0 0.0
  %351 = vmatpush1.msra.mxu0 0.0
  %352 = vmatprep.subr.mxu0 0.0
  %353 = vmatpush1.msra.mxu0 0.0
  %354 = vmatprep.subr.mxu0 0.0
  %355 = vmatpush1.msra.mxu0 0.0
  %356 = vmatprep.subr.mxu0 0.0
  %357 = vmatpush1.msra.mxu0 0.0
  %358 = vmatprep.subr.mxu0 0.0
  %359 = vmatpush1.msra.mxu0 0.0
  %360 = vmatprep.subr.mxu0 0.0
  %361 = vmatpush1.msra.mxu0 0.0
  %362 = vmatprep.subr.mxu0 0.0
  %363 = vmatpush1.msra.mxu0 0.0
  %364 = vmatprep.subr.mxu0 0.0
  %365 = vmatpush1.msra.mxu0 0.0
  %366 = vmatprep.subr.mxu0 0.0
  %367 = vmatpush1.msra.mxu0 0.0
  %368 = vmatprep.subr.mxu0 0.0
  %369 = vmatpush1.msra.mxu0 0.0
  %370 = vmatprep.mubr.f32.mxu0 0.0
  %371 = vmatmul.mubr.f32.gmra.mrb[0].mxu0 %v258
  %v372 = vpop.f32.mrb[0].mxu0
  %v373 = vadd.f32 0.0, %v372
  %v374 = vpop.f32.mrb[0].mxu0
  %375 = vmatprep.mubr.f32.mxu0 0.0
  %376 = vmatmul.mubr.f32.gmra.mrb[0].mxu0 %v259
  %v377 = vpop.f32.mrb[0].mxu0
  %v378 = vadd.f32 0.0, %v377
  %v379 = vpop.f32.mrb[0].mxu0
  %380 = vmatprep.mubr.f32.mxu0 0.0
  %381 = vmatmul.mubr.f32.gmra.mrb[0].mxu0 %v260
  %v382 = vpop.f32.mrb[0].mxu0
  %v383 = vadd.f32 0.0, %v382
  %v384 = vpop.f32.mrb[0].mxu0
  %385 = vmatprep.mubr.f32.mxu0 0.0
  %386 = vmatmul.mubr.f32.gmra.mrb[0].mxu0 %v261
  %v387 = vpop.f32.mrb[0].mxu0
  %v388 = vadd.f32 0.0, %v387
  %v389 = vpop.f32.mrb[0].mxu0
  %390 = vmatprep.mubr.f32.mxu0 0.0
  %391 = vmatmul.mubr.f32.gmra.mrb[0].mxu0 %v262
  %v392 = vpop.f32.mrb[0].mxu0
  %v393 = vadd.f32 0.0, %v392
  %v394 = vpop.f32.mrb[0].mxu0
  %395 = vmatprep.mubr.f32.mxu0 0.0
  %396 = vmatmul.mubr.f32.gmra.mrb[0].mxu0 %v263
  %v397 = vpop.f32.mrb[0].mxu0
  %v398 = vadd.f32 0.0, %v397
  %v399 = vpop.f32.mrb[0].mxu0
  %400 = vmatprep.mubr.f32.mxu0 0.0
  %401 = vmatmul.mubr.f32.gmra.mrb[0].mxu0 %v264
  %v402 = vpop.f32.mrb[0].mxu0
  %v403 = vadd.f32 0.0, %v402
  %v404 = vpop.f32.mrb[0].mxu0
  %405 = vmatprep.mubr.f32.mxu0 0.0
  %406 = vmatmul.mubr.f32.gmra.mrb[0].mxu0 %v265
  %v407 = vpop.f32.mrb[0].mxu0
  %v408 = vadd.f32 0.0, %v407
  %v409 = vpop.f32.mrb[0].mxu0
  %410 = vmatprep.mubr.f32.mxu0 0.0
  %411 = vmatmul.mubr.f32.gmra.mrb[0].mxu0 %v266
  %v412 = vpop.f32.mrb[0].mxu0
  %v413 = vadd.f32 0.0, %v412
  %v414 = vpop.f32.mrb[0].mxu0
  %415 = vmatprep.mubr.f32.mxu0 0.0
  %416 = vmatmul.mubr.f32.gmra.mrb[0].mxu0 %v267
  %v417 = vpop.f32.mrb[0].mxu0
  %v418 = vadd.f32 0.0, %v417
  %v419 = vpop.f32.mrb[0].mxu0
  %420 = vmatprep.mubr.f32.mxu0 0.0
  %421 = vmatmul.mubr.f32.gmra.mrb[0].mxu0 %v268
  %v422 = vpop.f32.mrb[0].mxu0
  %v423 = vadd.f32 0.0, %v422
  %v424 = vpop.f32.mrb[0].mxu0
  %425 = vmatprep.mubr.f32.mxu0 0.0
  %426 = vmatmul.mubr.f32.gmra.mrb[0].mxu0 %v269
  %v427 = vpop.f32.mrb[0].mxu0
  %v428 = vadd.f32 0.0, %v427
  %v429 = vpop.f32.mrb[0].mxu0
  %430 = vmatprep.mubr.f32.mxu0 0.0
  %431 = vmatmul.mubr.f32.gmra.mrb[0].mxu0 %v270
  %v432 = vpop.f32.mrb[0].mxu0
  %v433 = vadd.f32 0.0, %v432
  %v434 = vpop.f32.mrb[0].mxu0
  %435 = vmatprep.mubr.f32.mxu0 0.0
  %436 = vmatmul.mubr.f32.gmra.mrb[0].mxu0 %v271
  %v437 = vpop.f32.mrb[0].mxu0
  %v438 = vadd.f32 0.0, %v437
  %v439 = vpop.f32.mrb[0].mxu0
  %440 = vmatprep.mubr.f32.mxu0 0.0
  %441 = vmatmul.mubr.f32.gmra.mrb[0].mxu0 %v272
  %v442 = vpop.f32.mrb[0].mxu0
  %v443 = vadd.f32 0.0, %v442
  %v444 = vpop.f32.mrb[0].mxu0
  %445 = vmatprep.mubr.f32.mxu0 0.0
  %446 = vmatmul.mubr.f32.gmra.mrb[0].mxu0 %v273
  %v447 = vpop.f32.mrb[0].mxu0
  %v448 = vadd.f32 0.0, %v447
  %v449 = vpop.f32.mrb[0].mxu0
  %450 = vmatprep.mubr.f32.mxu0 0.0
  %451 = vmatmul.mubr.f32.gmra.mrb[0].mxu0 %v274
  %v452 = vpop.f32.mrb[0].mxu0
  %v453 = vadd.f32 0.0, %v452
  %v454 = vpop.f32.mrb[0].mxu0
  %455 = vmatprep.mubr.f32.mxu0 0.0
  %456 = vmatmul.mubr.f32.gmra.mrb[0].mxu0 %v275
  %v457 = vpop.f32.mrb[0].mxu0
  %v458 = vadd.f32 0.0, %v457
  %v459 = vpop.f32.mrb[0].mxu0
  %460 = vmatprep.mubr.f32.mxu0 0.0
  %461 = vmatmul.mubr.f32.gmra.mrb[0].mxu0 %v276
  %v462 = vpop.f32.mrb[0].mxu0
  %v463 = vadd.f32 0.0, %v462
  %v464 = vpop.f32.mrb[0].mxu0
  %465 = vmatprep.mubr.f32.mxu0 0.0
  %466 = vmatmul.mubr.f32.gmra.mrb[0].mxu0 %v277
  %v467 = vpop.f32.mrb[0].mxu0
  %v468 = vadd.f32 0.0, %v467
  %v469 = vpop.f32.mrb[0].mxu0
  %470 = vmatprep.mubr.f32.mxu0 0.0
  %471 = vmatmul.mubr.f32.gmra.mrb[0].mxu0 %v278
  %v472 = vpop.f32.mrb[0].mxu0
  %v473 = vadd.f32 0.0, %v472
  %v474 = vpop.f32.mrb[0].mxu0
  %475 = vmatprep.mubr.f32.mxu0 0.0
  %476 = vmatmul.mubr.f32.gmra.mrb[0].mxu0 %v279
  %v477 = vpop.f32.mrb[0].mxu0
  %v478 = vadd.f32 0.0, %v477
  %v479 = vpop.f32.mrb[0].mxu0
  %480 = vmatprep.mubr.f32.mxu0 0.0
  %481 = vmatmul.mubr.f32.gmra.mrb[0].mxu0 %v280
  %v482 = vpop.f32.mrb[0].mxu0
  %v483 = vadd.f32 0.0, %v482
  %v484 = vpop.f32.mrb[0].mxu0
  %485 = vmatprep.mubr.f32.mxu0 0.0
  %486 = vmatmul.mubr.f32.gmra.mrb[0].mxu0 %v281
  %v487 = vpop.f32.mrb[0].mxu0
  %v488 = vadd.f32 0.0, %v487
  %v489 = vpop.f32.mrb[0].mxu0
  %490 = vmatprep.mubr.f32.mxu0 0.0
  %491 = vmatmul.mubr.f32.gmra.mrb[0].mxu0 %v282
  %v492 = vpop.f32.mrb[0].mxu0
  %v493 = vadd.f32 0.0, %v492
  %v494 = vpop.f32.mrb[0].mxu0
  %495 = vmatprep.mubr.f32.mxu0 0.0
  %496 = vmatmul.mubr.f32.gmra.mrb[0].mxu0 %v283
  %v497 = vpop.f32.mrb[0].mxu0
  %v498 = vadd.f32 0.0, %v497
  %v499 = vpop.f32.mrb[0].mxu0
  %500 = vmatprep.mubr.f32.mxu0 0.0
  %501 = vmatmul.mubr.f32.gmra.mrb[0].mxu0 %v284
  %v502 = vpop.f32.mrb[0].mxu0
  %v503 = vadd.f32 0.0, %v502
  %v504 = vpop.f32.mrb[0].mxu0
  %505 = vmatprep.mubr.f32.mxu0 0.0
  %506 = vmatmul.mubr.f32.gmra.mrb[0].mxu0 %v285
  %v507 = vpop.f32.mrb[0].mxu0
  %v508 = vadd.f32 0.0, %v507
  %v509 = vpop.f32.mrb[0].mxu0
  %510 = vmatprep.mubr.f32.mxu0 0.0
  %511 = vmatmul.mubr.f32.gmra.mrb[0].mxu0 %v286
  %v512 = vpop.f32.mrb[0].mxu0
  %v513 = vadd.f32 0.0, %v512
  %v514 = vpop.f32.mrb[0].mxu0
  %515 = vmatprep.mubr.f32.mxu0 0.0
  %516 = vmatmul.mubr.f32.gmra.mrb[0].mxu0 %v287
  %v517 = vpop.f32.mrb[0].mxu0
  %v518 = vadd.f32 0.0, %v517
  %v519 = vpop.f32.mrb[0].mxu0
  %520 = vmatprep.mubr.f32.mxu0 0.0
  %521 = vmatmul.mubr.f32.gmra.mrb[0].mxu0 %v288
  %v522 = vpop.f32.mrb[0].mxu0
  %v523 = vadd.f32 0.0, %v522
  %v524 = vpop.f32.mrb[0].mxu0
  %525 = vmatprep.mubr.f32.mxu0 0.0
  %526 = vmatmul.mubr.f32.gmra.mrb[0].mxu0 %v289
  %v527 = vpop.f32.mrb[0].mxu0
  %v528 = vadd.f32 0.0, %v527
  %v529 = vpop.f32.mrb[0].mxu0
  %530 = vmatprep.mubr.f32.mxu0 0.0
  %531 = vmatmul.mubr.f32.gmra.mrb[0].mxu0 %v290
  %v532 = vpop.f32.mrb[0].mxu0
  %v533 = vadd.f32 0.0, %v532
  %v534 = vpop.f32.mrb[0].mxu0
  %535 = vmatprep.mubr.f32.mxu0 0.0
  %536 = vmatmul.mubr.f32.gmra.mrb[0].mxu0 %v291
  %v537 = vpop.f32.mrb[0].mxu0
  %v538 = vadd.f32 0.0, %v537
  %v539 = vpop.f32.mrb[0].mxu0
  %540 = vmatprep.mubr.f32.mxu0 0.0
  %541 = vmatmul.mubr.f32.gmra.mrb[0].mxu0 %v292
  %v542 = vpop.f32.mrb[0].mxu0
  %v543 = vadd.f32 0.0, %v542
  %v544 = vpop.f32.mrb[0].mxu0
  %545 = vmatprep.mubr.f32.mxu0 0.0
  %546 = vmatmul.mubr.f32.gmra.mrb[0].mxu0 %v293
  %v547 = vpop.f32.mrb[0].mxu0
  %v548 = vadd.f32 0.0, %v547
  %v549 = vpop.f32.mrb[0].mxu0
  %550 = vmatprep.mubr.f32.mxu0 0.0
  %551 = vmatmul.mubr.f32.gmra.mrb[0].mxu0 %v294
  %v552 = vpop.f32.mrb[0].mxu0
  %v553 = vadd.f32 0.0, %v552
  %v554 = vpop.f32.mrb[0].mxu0
  %555 = vmatprep.mubr.f32.mxu0 0.0
  %556 = vmatmul.mubr.f32.gmra.mrb[0].mxu0 %v295
  %v557 = vpop.f32.mrb[0].mxu0
  %v558 = vadd.f32 0.0, %v557
  %v559 = vpop.f32.mrb[0].mxu0
  %560 = vmatprep.mubr.f32.mxu0 0.0
  %561 = vmatmul.mubr.f32.gmra.mrb[0].mxu0 %v296
  %v562 = vpop.f32.mrb[0].mxu0
  %v563 = vadd.f32 0.0, %v562
  %v564 = vpop.f32.mrb[0].mxu0
  %565 = vmatprep.mubr.f32.mxu0 0.0
  %566 = vmatmul.mubr.f32.gmra.mrb[0].mxu0 %v297
  %v567 = vpop.f32.mrb[0].mxu0
  %v568 = vadd.f32 0.0, %v567
  %v569 = vpop.f32.mrb[0].mxu0
  %570 = vmatprep.mubr.f32.mxu0 0.0
  %571 = vmatmul.mubr.f32.gmra.mrb[0].mxu0 %v298
  %v572 = vpop.f32.mrb[0].mxu0
  %v573 = vadd.f32 0.0, %v572
  %v574 = vpop.f32.mrb[0].mxu0
  %575 = vmatprep.mubr.f32.mxu0 0.0
  %576 = vmatmul.mubr.f32.gmra.mrb[0].mxu0 %v299
  %v577 = vpop.f32.mrb[0].mxu0
  %v578 = vadd.f32 0.0, %v577
  %v579 = vpop.f32.mrb[0].mxu0
  %580 = vmatprep.mubr.f32.mxu0 0.0
  %581 = vmatmul.mubr.f32.gmra.mrb[0].mxu0 %v300
  %v582 = vpop.f32.mrb[0].mxu0
  %v583 = vadd.f32 0.0, %v582
  %v584 = vpop.f32.mrb[0].mxu0
  %585 = vmatprep.mubr.f32.mxu0 0.0
  %586 = vmatmul.mubr.f32.gmra.mrb[0].mxu0 %v301
  %v587 = vpop.f32.mrb[0].mxu0
  %v588 = vadd.f32 0.0, %v587
  %v589 = vpop.f32.mrb[0].mxu0
  %590 = vmatprep.mubr.f32.mxu0 0.0
  %591 = vmatmul.mubr.f32.gmra.mrb[0].mxu0 %v302
  %v592 = vpop.f32.mrb[0].mxu0
  %v593 = vadd.f32 0.0, %v592
  %v594 = vpop.f32.mrb[0].mxu0
  %595 = vmatprep.mubr.f32.mxu0 0.0
  %596 = vmatmul.mubr.f32.gmra.mrb[0].mxu0 %v303
  %v597 = vpop.f32.mrb[0].mxu0
  %v598 = vadd.f32 0.0, %v597
  %v599 = vpop.f32.mrb[0].mxu0
  %600 = vmatprep.mubr.f32.mxu0 0.0
  %601 = vmatmul.mubr.f32.gmra.mrb[0].mxu0 %v304
  %v602 = vpop.f32.mrb[0].mxu0
  %v603 = vadd.f32 0.0, %v602
  %v604 = vpop.f32.mrb[0].mxu0
  %605 = vmatprep.mubr.f32.mxu0 0.0
  %606 = vmatmul.mubr.f32.gmra.mrb[0].mxu0 %v305
  %v607 = vpop.f32.mrb[0].mxu0
  %v608 = vadd.f32 0.0, %v607
  %v609 = vpop.f32.mrb[0].mxu0
  %610 = vdwg.mxu0
  %v611 = vlaneseq
  %v612 = vshrl.u32 %v611, 7
  %v613 = vadd.s32 %v612, 8
  %v614 = vadd.s32 %v612, 16
  %v615 = vadd.s32 %v612, 24
  %v616 = vadd.s32 %v612, 32
  %v617 = vadd.s32 %v612, 40
  %v618 = vadd.s32 %v612, 48
  %v619 = vadd.s32 %v612, 56
  %v620 = vadd.s32 %v612, 64
  %v621 = vadd.s32 %v612, 72
  %v622 = vadd.s32 %v612, 80
  %v623 = vadd.s32 %v612, 88
  %v624 = vadd.s32 %v612, 96
  %v625 = vadd.s32 %v612, 104
  %v626 = vadd.s32 %v612, 112
  %v627 = vadd.s32 %v612, 120
  %vm628 = vcmp.lt.s32.totalorder %v612, 32
  %vm629 = vcmp.lt.s32.totalorder %v613, 32
  %vm630 = vcmp.lt.s32.totalorder %v614, 32
  %vm631 = vcmp.lt.s32.totalorder %v615, 32
  %vm632 = vcmp.lt.s32.totalorder %v616, 32
  %vm633 = vcmp.lt.s32.totalorder %v617, 32
  %vm634 = vcmp.lt.s32.totalorder %v618, 32
  %vm635 = vcmp.lt.s32.totalorder %v619, 32
  %vm636 = vcmp.lt.s32.totalorder %v620, 32
  %vm637 = vcmp.lt.s32.totalorder %v621, 32
  %vm638 = vcmp.lt.s32.totalorder %v622, 32
  %vm639 = vcmp.lt.s32.totalorder %v623, 32
  %vm640 = vcmp.lt.s32.totalorder %v624, 32
  %vm641 = vcmp.lt.s32.totalorder %v625, 32
  %vm642 = vcmp.lt.s32.totalorder %v626, 32
  %vm643 = vcmp.lt.s32.totalorder %v627, 32
  %v644 = vsel %vm628, 1, 0
  %v645 = vsel %vm629, 1, 0
  %v646 = vsel %vm630, 1, 0
  %v647 = vsel %vm631, 1, 0
  %v648 = vsel %vm632, 1, 0
  %v649 = vsel %vm633, 1, 0
  %v650 = vsel %vm634, 1, 0
  %v651 = vsel %vm635, 1, 0
  %v652 = vsel %vm636, 1, 0
  %v653 = vsel %vm637, 1, 0
  %v654 = vsel %vm638, 1, 0
  %v655 = vsel %vm639, 1, 0
  %v656 = vsel %vm640, 1, 0
  %v657 = vsel %vm641, 1, 0
  %v658 = vsel %vm642, 1, 0
  %v659 = vsel %vm643, 1, 0
  %v660 = vcvt.s32.f32 %v644
  %v661 = vcvt.s32.f32 %v645
  %v662 = vcvt.s32.f32 %v646
  %v663 = vcvt.s32.f32 %v647
  %v664 = vcvt.s32.f32 %v648
  %v665 = vcvt.s32.f32 %v649
  %v666 = vcvt.s32.f32 %v650
  %v667 = vcvt.s32.f32 %v651
  %v668 = vcvt.s32.f32 %v652
  %v669 = vcvt.s32.f32 %v653
  %v670 = vcvt.s32.f32 %v654
  %v671 = vcvt.s32.f32 %v655
  %v672 = vcvt.s32.f32 %v656
  %v673 = vcvt.s32.f32 %v657
  %v674 = vcvt.s32.f32 %v658
  %v675 = vcvt.s32.f32 %v659
  %v676 = vld [vmem:[%s5] sm:$0xf]
  %v677 = vadd.f32 %v26, %v373
  %v678 = vadd.f32 %v27, %v378
  %v679 = vadd.f32 %v28, %v383
  %v680 = vadd.f32 %v29, %v388
  %v681 = vadd.f32 %v30, %v393
  %v682 = vadd.f32 %v31, %v398
  %v683 = vadd.f32 %v32, %v403
  %v684 = vadd.f32 %v33, %v408
  %v685 = vadd.f32 %v34, %v413
  %v686 = vadd.f32 %v35, %v418
  %v687 = vadd.f32 %v36, %v423
  %v688 = vadd.f32 %v37, %v428
  %v689 = vadd.f32 %v38, %v433
  %v690 = vadd.f32 %v39, %v438
  %v691 = vadd.f32 %v40, %v443
  %v692 = vadd.f32 %v41, %v448
  %v693 = vld [vmem:[%s4] sm:$0xff]
  %v694 = vld [vmem:[%s4 + $0x8] sm:$0xff]
  %v695 = vld [vmem:[%s4 + $0x10] sm:$0xff]
  %v696 = vld [vmem:[%s4 + $0x18] sm:$0xff]
  %v697 = vld [vmem:[%s4 + $0x20] sm:$0xff]
  %v698 = vld [vmem:[%s4 + $0x28] sm:$0xff]
  %v699 = vld [vmem:[%s4 + $0x30] sm:$0xff]
  %v700 = vld [vmem:[%s4 + $0x38] sm:$0xff]
  %v701 = vld [vmem:[%s4 + $0x40] sm:$0xff]
  %v702 = vld [vmem:[%s4 + $0x48] sm:$0xff]
  %v703 = vld [vmem:[%s4 + $0x50] sm:$0xff]
  %v704 = vld [vmem:[%s4 + $0x58] sm:$0xff]
  %v705 = vld [vmem:[%s4 + $0x60] sm:$0xff]
  %v706 = vld [vmem:[%s4 + $0x68] sm:$0xff]
  %v707 = vld [vmem:[%s4 + $0x70] sm:$0xff]
  %v708 = vld [vmem:[%s4 + $0x78] sm:$0xff]
  %v709 = vlaneseq
  %v710 = vshrl.u32 %v709, 7
  %v711 = vsub.s32 0, %v710
  %v712 = vrot.slane %v676, %v711
  %713 = vmatprep.subr.mxu0 0.0
  %714 = vmatpush1.msra.mxu0 %v693
  %715 = vmatprep.subr.mxu0 0.0
  %716 = vmatpush1.msra.mxu0 %v694
  %717 = vmatprep.subr.mxu0 0.0
  %718 = vmatpush1.msra.mxu0 %v695
  %719 = vmatprep.subr.mxu0 0.0
  %720 = vmatpush1.msra.mxu0 %v696
  %721 = vmatprep.subr.mxu0 0.0
  %722 = vmatpush1.msra.mxu0 %v697
  %723 = vmatprep.subr.mxu0 0.0
  %724 = vmatpush1.msra.mxu0 %v698
  %725 = vmatprep.subr.mxu0 0.0
  %726 = vmatpush1.msra.mxu0 %v699
  %727 = vmatprep.subr.mxu0 0.0
  %728 = vmatpush1.msra.mxu0 %v700
  %729 = vmatprep.subr.mxu0 0.0
  %730 = vmatpush1.msra.mxu0 %v701
  %731 = vmatprep.subr.mxu0 0.0
  %732 = vmatpush1.msra.mxu0 %v702
  %733 = vmatprep.subr.mxu0 0.0
  %734 = vmatpush1.msra.mxu0 %v703
  %735 = vmatprep.subr.mxu0 0.0
  %736 = vmatpush1.msra.mxu0 %v704
  %737 = vmatprep.subr.mxu0 0.0
  %738 = vmatpush1.msra.mxu0 %v705
  %739 = vmatprep.subr.mxu0 0.0
  %740 = vmatpush1.msra.mxu0 %v706
  %741 = vmatprep.subr.mxu0 0.0
  %742 = vmatpush1.msra.mxu0 %v707
  %743 = vmatprep.subr.mxu0 0.0
  %744 = vmatpush1.msra.mxu0 %v708
  %745 = vmatprep.subr.mxu0 0.0
  %746 = vmatpush1.msra.mxu0 0.0
  %747 = vmatprep.subr.mxu0 0.0
  %748 = vmatpush1.msra.mxu0 0.0
  %749 = vmatprep.subr.mxu0 0.0
  %750 = vmatpush1.msra.mxu0 0.0
  %751 = vmatprep.subr.mxu0 0.0
  %752 = vmatpush1.msra.mxu0 0.0
  %753 = vmatprep.subr.mxu0 0.0
  %754 = vmatpush1.msra.mxu0 0.0
  %755 = vmatprep.subr.mxu0 0.0
  %756 = vmatpush1.msra.mxu0 0.0
  %757 = vmatprep.subr.mxu0 0.0
  %758 = vmatpush1.msra.mxu0 0.0
  %759 = vmatprep.subr.mxu0 0.0
  %760 = vmatpush1.msra.mxu0 0.0
  %761 = vmatprep.subr.mxu0 0.0
  %762 = vmatpush1.msra.mxu0 0.0
  %763 = vmatprep.subr.mxu0 0.0
  %764 = vmatpush1.msra.mxu0 0.0
  %765 = vmatprep.subr.mxu0 0.0
  %766 = vmatpush1.msra.mxu0 0.0
  %767 = vmatprep.subr.mxu0 0.0
  %768 = vmatpush1.msra.mxu0 0.0
  %769 = vmatprep.subr.mxu0 0.0
  %770 = vmatpush1.msra.mxu0 0.0
  %771 = vmatprep.subr.mxu0 0.0
  %772 = vmatpush1.msra.mxu0 0.0
  %773 = vmatprep.subr.mxu0 0.0
  %774 = vmatpush1.msra.mxu0 0.0
  %775 = vmatprep.subr.mxu0 0.0
  %776 = vmatpush1.msra.mxu0 0.0
  %777 = vmatprep.mubr.f32.mxu0 0.0
  %778 = vmatmul.mubr.f32.gmra.mrb[0].mxu0 %v677
  %v779 = vpop.f32.mrb[0].mxu0
  %v780 = vadd.f32 %v712, %v779
  %v781 = vpop.f32.mrb[0].mxu0
  %782 = vmatprep.mubr.f32.mxu0 0.0
  %783 = vmatmul.mubr.f32.gmra.mrb[0].mxu0 %v678
  %v784 = vpop.f32.mrb[0].mxu0
  %v785 = vadd.f32 %v712, %v784
  %v786 = vpop.f32.mrb[0].mxu0
  %787 = vmatprep.mubr.f32.mxu0 0.0
  %788 = vmatmul.mubr.f32.gmra.mrb[0].mxu0 %v679
  %v789 = vpop.f32.mrb[0].mxu0
  %v790 = vadd.f32 %v712, %v789
  %v791 = vpop.f32.mrb[0].mxu0
  %792 = vmatprep.mubr.f32.mxu0 0.0
  %793 = vmatmul.mubr.f32.gmra.mrb[0].mxu0 %v680
  %v794 = vpop.f32.mrb[0].mxu0
  %v795 = vadd.f32 %v712, %v794
  %v796 = vpop.f32.mrb[0].mxu0
  %797 = vmatprep.mubr.f32.mxu0 0.0
  %798 = vmatmul.mubr.f32.gmra.mrb[0].mxu0 %v681
  %v799 = vpop.f32.mrb[0].mxu0
  %v800 = vadd.f32 %v712, %v799
  %v801 = vpop.f32.mrb[0].mxu0
  %802 = vmatprep.mubr.f32.mxu0 0.0
  %803 = vmatmul.mubr.f32.gmra.mrb[0].mxu0 %v682
  %v804 = vpop.f32.mrb[0].mxu0
  %v805 = vadd.f32 %v712, %v804
  %v806 = vpop.f32.mrb[0].mxu0
  %807 = vmatprep.mubr.f32.mxu0 0.0
  %808 = vmatmul.mubr.f32.gmra.mrb[0].mxu0 %v683
  %v809 = vpop.f32.mrb[0].mxu0
  %v810 = vadd.f32 %v712, %v809
  %v811 = vpop.f32.mrb[0].mxu0
  %812 = vmatprep.mubr.f32.mxu0 0.0
  %813 = vmatmul.mubr.f32.gmra.mrb[0].mxu0 %v684
  %v814 = vpop.f32.mrb[0].mxu0
  %v815 = vadd.f32 %v712, %v814
  %v816 = vpop.f32.mrb[0].mxu0
  %817 = vmatprep.mubr.f32.mxu0 0.0
  %818 = vmatmul.mubr.f32.gmra.mrb[0].mxu0 %v685
  %v819 = vpop.f32.mrb[0].mxu0
  %v820 = vadd.f32 %v712, %v819
  %v821 = vpop.f32.mrb[0].mxu0
  %822 = vmatprep.mubr.f32.mxu0 0.0
  %823 = vmatmul.mubr.f32.gmra.mrb[0].mxu0 %v686
  %v824 = vpop.f32.mrb[0].mxu0
  %v825 = vadd.f32 %v712, %v824
  %v826 = vpop.f32.mrb[0].mxu0
  %827 = vmatprep.mubr.f32.mxu0 0.0
  %828 = vmatmul.mubr.f32.gmra.mrb[0].mxu0 %v687
  %v829 = vpop.f32.mrb[0].mxu0
  %v830 = vadd.f32 %v712, %v829
  %v831 = vpop.f32.mrb[0].mxu0
  %832 = vmatprep.mubr.f32.mxu0 0.0
  %833 = vmatmul.mubr.f32.gmra.mrb[0].mxu0 %v688
  %v834 = vpop.f32.mrb[0].mxu0
  %v835 = vadd.f32 %v712, %v834
  %v836 = vpop.f32.mrb[0].mxu0
  %837 = vmatprep.mubr.f32.mxu0 0.0
  %838 = vmatmul.mubr.f32.gmra.mrb[0].mxu0 %v689
  %v839 = vpop.f32.mrb[0].mxu0
  %v840 = vadd.f32 %v712, %v839
  %v841 = vpop.f32.mrb[0].mxu0
  %842 = vmatprep.mubr.f32.mxu0 0.0
  %843 = vmatmul.mubr.f32.gmra.mrb[0].mxu0 %v690
  %v844 = vpop.f32.mrb[0].mxu0
  %v845 = vadd.f32 %v712, %v844
  %v846 = vpop.f32.mrb[0].mxu0
  %847 = vmatprep.mubr.f32.mxu0 0.0
  %848 = vmatmul.mubr.f32.gmra.mrb[0].mxu0 %v691
  %v849 = vpop.f32.mrb[0].mxu0
  %v850 = vadd.f32 %v712, %v849
  %v851 = vpop.f32.mrb[0].mxu0
  %852 = vmatprep.mubr.f32.mxu0 0.0
  %853 = vmatmul.mubr.f32.gmra.mrb[0].mxu0 %v692
  %v854 = vpop.f32.mrb[0].mxu0
  %v855 = vadd.f32 %v712, %v854
  %v856 = vpop.f32.mrb[0].mxu0
  %857 = vdwg.mxu0
  %v858 = vmul.f32 %v780, %v660
  %v859 = vmul.f32 %v785, %v661
  %v860 = vmul.f32 %v790, %v662
  %v861 = vmul.f32 %v795, %v663
  %v862 = vmul.f32 %v800, %v664
  %v863 = vmul.f32 %v805, %v665
  %v864 = vmul.f32 %v810, %v666
  %v865 = vmul.f32 %v815, %v667
  %v866 = vmul.f32 %v820, %v668
  %v867 = vmul.f32 %v825, %v669
  %v868 = vmul.f32 %v830, %v670
  %v869 = vmul.f32 %v835, %v671
  %v870 = vmul.f32 %v840, %v672
  %v871 = vmul.f32 %v845, %v673
  %v872 = vmul.f32 %v850, %v674
  %v873 = vmul.f32 %v855, %v675
  %v874 = vadd.f32 %v858, %v859
  %v875 = vadd.f32 %v874, %v860
  %v876 = vadd.f32 %v875, %v861
  %v877 = vadd.f32 %v876, %v862
  %v878 = vadd.f32 %v877, %v863
  %v879 = vadd.f32 %v878, %v864
  %v880 = vadd.f32 %v879, %v865
  %v881 = vadd.f32 %v880, %v866
  %v882 = vadd.f32 %v881, %v867
  %v883 = vadd.f32 %v882, %v868
  %v884 = vadd.f32 %v883, %v869
  %v885 = vadd.f32 %v884, %v870
  %v886 = vadd.f32 %v885, %v871
  %v887 = vadd.f32 %v886, %v872
  %v888 = vadd.f32 %v887, %v873
  %v889 = vrot.slane %v888, 4
  %v890 = vadd.f32 %v888, %v889
  %v891 = vrot.slane %v890, 2
  %v892 = vadd.f32 %v890, %v891
  %v893 = vrot.slane %v892, 1
  %v894 = vadd.f32 %v892, %v893
  %v895 = vmul.f32 %v894, 0.03125
  %v896 = vsub.f32 %v780, %v895
  %v897 = vsub.f32 %v785, %v895
  %v898 = vsub.f32 %v790, %v895
  %v899 = vsub.f32 %v795, %v895
  %v900 = vsub.f32 %v800, %v895
  %v901 = vsub.f32 %v805, %v895
  %v902 = vsub.f32 %v810, %v895
  %v903 = vsub.f32 %v815, %v895
  %v904 = vsub.f32 %v820, %v895
  %v905 = vsub.f32 %v825, %v895
  %v906 = vsub.f32 %v830, %v895
  %v907 = vsub.f32 %v835, %v895
  %v908 = vsub.f32 %v840, %v895
  %v909 = vsub.f32 %v845, %v895
  %v910 = vsub.f32 %v850, %v895
  %v911 = vsub.f32 %v855, %v895
  %v912 = vmul.f32 %v896, %v896
  %v913 = vmul.f32 %v897, %v897
  %v914 = vmul.f32 %v898, %v898
  %v915 = vmul.f32 %v899, %v899
  %v916 = vmul.f32 %v900, %v900
  %v917 = vmul.f32 %v901, %v901
  %v918 = vmul.f32 %v902, %v902
  %v919 = vmul.f32 %v903, %v903
  %v920 = vmul.f32 %v904, %v904
  %v921 = vmul.f32 %v905, %v905
  %v922 = vmul.f32 %v906, %v906
  %v923 = vmul.f32 %v907, %v907
  %v924 = vmul.f32 %v908, %v908
  %v925 = vmul.f32 %v909, %v909
  %v926 = vmul.f32 %v910, %v910
  %v927 = vmul.f32 %v911, %v911
  %v928 = vmul.f32 %v912, %v660
  %v929 = vmul.f32 %v913, %v661
  %v930 = vmul.f32 %v914, %v662
  %v931 = vmul.f32 %v915, %v663
  %v932 = vmul.f32 %v916, %v664
  %v933 = vmul.f32 %v917, %v665
  %v934 = vmul.f32 %v918, %v666
  %v935 = vmul.f32 %v919, %v667
  %v936 = vmul.f32 %v920, %v668
  %v937 = vmul.f32 %v921, %v669
  %v938 = vmul.f32 %v922, %v670
  %v939 = vmul.f32 %v923, %v671
  %v940 = vmul.f32 %v924, %v672
  %v941 = vmul.f32 %v925, %v673
  %v942 = vmul.f32 %v926, %v674
  %v943 = vmul.f32 %v927, %v675
  %v944 = vadd.f32 %v928, %v929
  %v945 = vadd.f32 %v944, %v930
  %v946 = vadd.f32 %v945, %v931
  %v947 = vadd.f32 %v946, %v932
  %v948 = vadd.f32 %v947, %v933
  %v949 = vadd.f32 %v948, %v934
  %v950 = vadd.f32 %v949, %v935
  %v951 = vadd.f32 %v950, %v936
  %v952 = vadd.f32 %v951, %v937
  %v953 = vadd.f32 %v952, %v938
  %v954 = vadd.f32 %v953, %v939
  %v955 = vadd.f32 %v954, %v940
  %v956 = vadd.f32 %v955, %v941
  %v957 = vadd.f32 %v956, %v942
  %v958 = vadd.f32 %v957, %v943
  %v959 = vrot.slane %v958, 4
  %v960 = vadd.f32 %v958, %v959
  %v961 = vrot.slane %v960, 2
  %v962 = vadd.f32 %v960, %v961
  %v963 = vrot.slane %v962, 1
  %v964 = vadd.f32 %v962, %v963
  %v965 = vmul.f32 %v964, 0.03125
  %v966 = vadd.f32 %v965, 1e-05
  %v967 = vrsqrt.pop %v966
  %v968 = vmul.f32 %v896, %v967
  %v969 = vmul.f32 %v897, %v967
  %v970 = vmul.f32 %v898, %v967
  %v971 = vmul.f32 %v899, %v967
  %v972 = vmul.f32 %v900, %v967
  %v973 = vmul.f32 %v901, %v967
  %v974 = vmul.f32 %v902, %v967
  %v975 = vmul.f32 %v903, %v967
  %v976 = vmul.f32 %v904, %v967
  %v977 = vmul.f32 %v905, %v967
  %v978 = vmul.f32 %v906, %v967
  %v979 = vmul.f32 %v907, %v967
  %v980 = vmul.f32 %v908, %v967
  %v981 = vmul.f32 %v909, %v967
  %v982 = vmul.f32 %v910, %v967
  %v983 = vmul.f32 %v911, %v967
  %v984 = vlaneseq
  %v985 = vshrl.u32 %v984, 7
  %v986 = vsub.s32 1, %v985
  %v987 = vrot.slane %v676, %v986
  %v988 = vmul.f32 %v968, %v987
  %v989 = vmul.f32 %v969, %v987
  %v990 = vmul.f32 %v970, %v987
  %v991 = vmul.f32 %v971, %v987
  %v992 = vmul.f32 %v972, %v987
  %v993 = vmul.f32 %v973, %v987
  %v994 = vmul.f32 %v974, %v987
  %v995 = vmul.f32 %v975, %v987
  %v996 = vmul.f32 %v976, %v987
  %v997 = vmul.f32 %v977, %v987
  %v998 = vmul.f32 %v978, %v987
  %v999 = vmul.f32 %v979, %v987
  %v1000 = vmul.f32 %v980, %v987
  %v1001 = vmul.f32 %v981, %v987
  %v1002 = vmul.f32 %v982, %v987
  %v1003 = vmul.f32 %v983, %v987
  %v1004 = vlaneseq
  %v1005 = vshrl.u32 %v1004, 7
  %v1006 = vsub.s32 2, %v1005
  %v1007 = vrot.slane %v676, %v1006
  %v1008 = vadd.f32 %v988, %v1007
  %v1009 = vadd.f32 %v989, %v1007
  %v1010 = vadd.f32 %v990, %v1007
  %v1011 = vadd.f32 %v991, %v1007
  %v1012 = vadd.f32 %v992, %v1007
  %v1013 = vadd.f32 %v993, %v1007
  %v1014 = vadd.f32 %v994, %v1007
  %v1015 = vadd.f32 %v995, %v1007
  %v1016 = vadd.f32 %v996, %v1007
  %v1017 = vadd.f32 %v997, %v1007
  %v1018 = vadd.f32 %v998, %v1007
  %v1019 = vadd.f32 %v999, %v1007
  %v1020 = vadd.f32 %v1000, %v1007
  %v1021 = vadd.f32 %v1001, %v1007
  %v1022 = vadd.f32 %v1002, %v1007
  %v1023 = vadd.f32 %v1003, %v1007
  %v1024 = vmax.f32 %v1008, 0.0
  %v1025 = vmax.f32 %v1009, 0.0
  %v1026 = vmax.f32 %v1010, 0.0
  %v1027 = vmax.f32 %v1011, 0.0
  %v1028 = vmax.f32 %v1012, 0.0
  %v1029 = vmax.f32 %v1013, 0.0
  %v1030 = vmax.f32 %v1014, 0.0
  %v1031 = vmax.f32 %v1015, 0.0
  %v1032 = vmax.f32 %v1016, 0.0
  %v1033 = vmax.f32 %v1017, 0.0
  %v1034 = vmax.f32 %v1018, 0.0
  %v1035 = vmax.f32 %v1019, 0.0
  %v1036 = vmax.f32 %v1020, 0.0
  %v1037 = vmax.f32 %v1021, 0.0
  %v1038 = vmax.f32 %v1022, 0.0
  %v1039 = vmax.f32 %v1023, 0.0
  %v1040 = vld [vmem:[%s6] sm:$0xff]
  %v1041 = vld [vmem:[%s6 + $0x8] sm:$0xff]
  %v1042 = vld [vmem:[%s6 + $0x10] sm:$0xff]
  %v1043 = vld [vmem:[%s6 + $0x18] sm:$0xff]
  %v1044 = vld [vmem:[%s6 + $0x20] sm:$0xff]
  %v1045 = vld [vmem:[%s6 + $0x28] sm:$0xff]
  %v1046 = vld [vmem:[%s6 + $0x30] sm:$0xff]
  %v1047 = vld [vmem:[%s6 + $0x38] sm:$0xff]
  %v1048 = vld [vmem:[%s6 + $0x40] sm:$0xff]
  %v1049 = vld [vmem:[%s6 + $0x48] sm:$0xff]
  %v1050 = vld [vmem:[%s6 + $0x50] sm:$0xff]
  %v1051 = vld [vmem:[%s6 + $0x58] sm:$0xff]
  %v1052 = vld [vmem:[%s6 + $0x60] sm:$0xff]
  %v1053 = vld [vmem:[%s6 + $0x68] sm:$0xff]
  %v1054 = vld [vmem:[%s6 + $0x70] sm:$0xff]
  %v1055 = vld [vmem:[%s6 + $0x78] sm:$0xff]
  %1056 = vmatprep.subr.mxu0 0.0
  %1057 = vmatpush1.msra.mxu0 %v1040
  %1058 = vmatprep.subr.mxu0 0.0
  %1059 = vmatpush1.msra.mxu0 %v1041
  %1060 = vmatprep.subr.mxu0 0.0
  %1061 = vmatpush1.msra.mxu0 %v1042
  %1062 = vmatprep.subr.mxu0 0.0
  %1063 = vmatpush1.msra.mxu0 %v1043
  %1064 = vmatprep.subr.mxu0 0.0
  %1065 = vmatpush1.msra.mxu0 %v1044
  %1066 = vmatprep.subr.mxu0 0.0
  %1067 = vmatpush1.msra.mxu0 %v1045
  %1068 = vmatprep.subr.mxu0 0.0
  %1069 = vmatpush1.msra.mxu0 %v1046
  %1070 = vmatprep.subr.mxu0 0.0
  %1071 = vmatpush1.msra.mxu0 %v1047
  %1072 = vmatprep.subr.mxu0 0.0
  %1073 = vmatpush1.msra.mxu0 %v1048
  %1074 = vmatprep.subr.mxu0 0.0
  %1075 = vmatpush1.msra.mxu0 %v1049
  %1076 = vmatprep.subr.mxu0 0.0
  %1077 = vmatpush1.msra.mxu0 %v1050
  %1078 = vmatprep.subr.mxu0 0.0
  %1079 = vmatpush1.msra.mxu0 %v1051
  %1080 = vmatprep.subr.mxu0 0.0
  %1081 = vmatpush1.msra.mxu0 %v1052
  %1082 = vmatprep.subr.mxu0 0.0
  %1083 = vmatpush1.msra.mxu0 %v1053
  %1084 = vmatprep.subr.mxu0 0.0
  %1085 = vmatpush1.msra.mxu0 %v1054
  %1086 = vmatprep.subr.mxu0 0.0
  %1087 = vmatpush1.msra.mxu0 %v1055
  %1088 = vmatprep.subr.mxu0 0.0
  %1089 = vmatpush1.msra.mxu0 0.0
  %1090 = vmatprep.subr.mxu0 0.0
  %1091 = vmatpush1.msra.mxu0 0.0
  %1092 = vmatprep.subr.mxu0 0.0
  %1093 = vmatpush1.msra.mxu0 0.0
  %1094 = vmatprep.subr.mxu0 0.0
  %1095 = vmatpush1.msra.mxu0 0.0
  %1096 = vmatprep.subr.mxu0 0.0
  %1097 = vmatpush1.msra.mxu0 0.0
  %1098 = vmatprep.subr.mxu0 0.0
  %1099 = vmatpush1.msra.mxu0 0.0
  %1100 = vmatprep.subr.mxu0 0.0
  %1101 = vmatpush1.msra.mxu0 0.0
  %1102 = vmatprep.subr.mxu0 0.0
  %1103 = vmatpush1.msra.mxu0 0.0
  %1104 = vmatprep.subr.mxu0 0.0
  %1105 = vmatpush1.msra.mxu0 0.0
  %1106 = vmatprep.subr.mxu0 0.0
  %1107 = vmatpush1.msra.mxu0 0.0
  %1108 = vmatprep.subr.mxu0 0.0
  %1109 = vmatpush1.msra.mxu0 0.0
  %1110 = vmatprep.subr.mxu0 0.0
  %1111 = vmatpush1.msra.mxu0 0.0
  %1112 = vmatprep.subr.mxu0 0.0
  %1113 = vmatpush1.msra.mxu0 0.0
  %1114 = vmatprep.subr.mxu0 0.0
  %1115 = vmatpush1.msra.mxu0 0.0
  %1116 = vmatprep.subr.mxu0 0.0
  %1117 = vmatpush1.msra.mxu0 0.0
  %1118 = vmatprep.subr.mxu0 0.0
  %1119 = vmatpush1.msra.mxu0 0.0
  %1120 = vmatprep.mubr.f32.mxu0 0.0
  %1121 = vmatmul.mubr.f32.gmra.mrb[0].mxu0 %v1024
  %v1122 = vpop.f32.mrb[0].mxu0
  %v1123 = vadd.f32 0.0, %v1122
  %v1124 = vpop.f32.mrb[0].mxu0
  %1125 = vmatprep.mubr.f32.mxu0 0.0
  %1126 = vmatmul.mubr.f32.gmra.mrb[0].mxu0 %v1025
  %v1127 = vpop.f32.mrb[0].mxu0
  %v1128 = vadd.f32 0.0, %v1127
  %v1129 = vpop.f32.mrb[0].mxu0
  %1130 = vmatprep.mubr.f32.mxu0 0.0
  %1131 = vmatmul.mubr.f32.gmra.mrb[0].mxu0 %v1026
  %v1132 = vpop.f32.mrb[0].mxu0
  %v1133 = vadd.f32 0.0, %v1132
  %v1134 = vpop.f32.mrb[0].mxu0
  %1135 = vmatprep.mubr.f32.mxu0 0.0
  %1136 = vmatmul.mubr.f32.gmra.mrb[0].mxu0 %v1027
  %v1137 = vpop.f32.mrb[0].mxu0
  %v1138 = vadd.f32 0.0, %v1137
  %v1139 = vpop.f32.mrb[0].mxu0
  %1140 = vmatprep.mubr.f32.mxu0 0.0
  %1141 = vmatmul.mubr.f32.gmra.mrb[0].mxu0 %v1028
  %v1142 = vpop.f32.mrb[0].mxu0
  %v1143 = vadd.f32 0.0, %v1142
  %v1144 = vpop.f32.mrb[0].mxu0
  %1145 = vmatprep.mubr.f32.mxu0 0.0
  %1146 = vmatmul.mubr.f32.gmra.mrb[0].mxu0 %v1029
  %v1147 = vpop.f32.mrb[0].mxu0
  %v1148 = vadd.f32 0.0, %v1147
  %v1149 = vpop.f32.mrb[0].mxu0
  %1150 = vmatprep.mubr.f32.mxu0 0.0
  %1151 = vmatmul.mubr.f32.gmra.mrb[0].mxu0 %v1030
  %v1152 = vpop.f32.mrb[0].mxu0
  %v1153 = vadd.f32 0.0, %v1152
  %v1154 = vpop.f32.mrb[0].mxu0
  %1155 = vmatprep.mubr.f32.mxu0 0.0
  %1156 = vmatmul.mubr.f32.gmra.mrb[0].mxu0 %v1031
  %v1157 = vpop.f32.mrb[0].mxu0
  %v1158 = vadd.f32 0.0, %v1157
  %v1159 = vpop.f32.mrb[0].mxu0
  %1160 = vmatprep.mubr.f32.mxu0 0.0
  %1161 = vmatmul.mubr.f32.gmra.mrb[0].mxu0 %v1032
  %v1162 = vpop.f32.mrb[0].mxu0
  %v1163 = vadd.f32 0.0, %v1162
  %v1164 = vpop.f32.mrb[0].mxu0
  %1165 = vmatprep.mubr.f32.mxu0 0.0
  %1166 = vmatmul.mubr.f32.gmra.mrb[0].mxu0 %v1033
  %v1167 = vpop.f32.mrb[0].mxu0
  %v1168 = vadd.f32 0.0, %v1167
  %v1169 = vpop.f32.mrb[0].mxu0
  %1170 = vmatprep.mubr.f32.mxu0 0.0
  %1171 = vmatmul.mubr.f32.gmra.mrb[0].mxu0 %v1034
  %v1172 = vpop.f32.mrb[0].mxu0
  %v1173 = vadd.f32 0.0, %v1172
  %v1174 = vpop.f32.mrb[0].mxu0
  %1175 = vmatprep.mubr.f32.mxu0 0.0
  %1176 = vmatmul.mubr.f32.gmra.mrb[0].mxu0 %v1035
  %v1177 = vpop.f32.mrb[0].mxu0
  %v1178 = vadd.f32 0.0, %v1177
  %v1179 = vpop.f32.mrb[0].mxu0
  %1180 = vmatprep.mubr.f32.mxu0 0.0
  %1181 = vmatmul.mubr.f32.gmra.mrb[0].mxu0 %v1036
  %v1182 = vpop.f32.mrb[0].mxu0
  %v1183 = vadd.f32 0.0, %v1182
  %v1184 = vpop.f32.mrb[0].mxu0
  %1185 = vmatprep.mubr.f32.mxu0 0.0
  %1186 = vmatmul.mubr.f32.gmra.mrb[0].mxu0 %v1037
  %v1187 = vpop.f32.mrb[0].mxu0
  %v1188 = vadd.f32 0.0, %v1187
  %v1189 = vpop.f32.mrb[0].mxu0
  %1190 = vmatprep.mubr.f32.mxu0 0.0
  %1191 = vmatmul.mubr.f32.gmra.mrb[0].mxu0 %v1038
  %v1192 = vpop.f32.mrb[0].mxu0
  %v1193 = vadd.f32 0.0, %v1192
  %v1194 = vpop.f32.mrb[0].mxu0
  %1195 = vmatprep.mubr.f32.mxu0 0.0
  %1196 = vmatmul.mubr.f32.gmra.mrb[0].mxu0 %v1039
  %v1197 = vpop.f32.mrb[0].mxu0
  %v1198 = vadd.f32 0.0, %v1197
  %v1199 = vpop.f32.mrb[0].mxu0
  %1200 = vdwg.mxu0
  %v1201 = vadd.f32 %v132, %v1123
  %v1202 = vadd.f32 %v137, %v1128
  %v1203 = vadd.f32 %v142, %v1133
  %v1204 = vadd.f32 %v147, %v1138
  %v1205 = vadd.f32 %v152, %v1143
  %v1206 = vadd.f32 %v157, %v1148
  %v1207 = vadd.f32 %v162, %v1153
  %v1208 = vadd.f32 %v167, %v1158
  %v1209 = vadd.f32 %v172, %v1163
  %v1210 = vadd.f32 %v177, %v1168
  %v1211 = vadd.f32 %v182, %v1173
  %v1212 = vadd.f32 %v187, %v1178
  %v1213 = vadd.f32 %v192, %v1183
  %v1214 = vadd.f32 %v197, %v1188
  %v1215 = vadd.f32 %v202, %v1193
  %v1216 = vadd.f32 %v207, %v1198
  %v1217 = vlaneseq
  %v1218 = vshrl.u32 %v1217, 7
  %v1219 = vsub.s32 3, %v1218
  %v1220 = vrot.slane %v676, %v1219
  %v1221 = vadd.f32 %v1201, %v1220
  %v1222 = vadd.f32 %v1202, %v1220
  %v1223 = vadd.f32 %v1203, %v1220
  %v1224 = vadd.f32 %v1204, %v1220
  %v1225 = vadd.f32 %v1205, %v1220
  %v1226 = vadd.f32 %v1206, %v1220
  %v1227 = vadd.f32 %v1207, %v1220
  %v1228 = vadd.f32 %v1208, %v1220
  %v1229 = vadd.f32 %v1209, %v1220
  %v1230 = vadd.f32 %v1210, %v1220
  %v1231 = vadd.f32 %v1211, %v1220
  %v1232 = vadd.f32 %v1212, %v1220
  %v1233 = vadd.f32 %v1213, %v1220
  %v1234 = vadd.f32 %v1214, %v1220
  %v1235 = vadd.f32 %v1215, %v1220
  %v1236 = vadd.f32 %v1216, %v1220
  %s1237 = scalar_lea.vmem %s5, 4
  %v1238 = vld [vmem:[%s1237] sm:$0xf]
  %v1239 = vadd.f32 %v26, %v453
  %v1240 = vadd.f32 %v27, %v458
  %v1241 = vadd.f32 %v28, %v463
  %v1242 = vadd.f32 %v29, %v468
  %v1243 = vadd.f32 %v30, %v473
  %v1244 = vadd.f32 %v31, %v478
  %v1245 = vadd.f32 %v32, %v483
  %v1246 = vadd.f32 %v33, %v488
  %v1247 = vadd.f32 %v34, %v493
  %v1248 = vadd.f32 %v35, %v498
  %v1249 = vadd.f32 %v36, %v503
  %v1250 = vadd.f32 %v37, %v508
  %v1251 = vadd.f32 %v38, %v513
  %v1252 = vadd.f32 %v39, %v518
  %v1253 = vadd.f32 %v40, %v523
  %v1254 = vadd.f32 %v41, %v528
  %s1255 = scalar_lea.vmem %s4, 128
  %v1256 = vld [vmem:[%s1255] sm:$0xff]
  %v1257 = vld [vmem:[%s1255 + $0x8] sm:$0xff]
  %v1258 = vld [vmem:[%s1255 + $0x10] sm:$0xff]
  %v1259 = vld [vmem:[%s1255 + $0x18] sm:$0xff]
  %v1260 = vld [vmem:[%s1255 + $0x20] sm:$0xff]
  %v1261 = vld [vmem:[%s1255 + $0x28] sm:$0xff]
  %v1262 = vld [vmem:[%s1255 + $0x30] sm:$0xff]
  %v1263 = vld [vmem:[%s1255 + $0x38] sm:$0xff]
  %v1264 = vld [vmem:[%s1255 + $0x40] sm:$0xff]
  %v1265 = vld [vmem:[%s1255 + $0x48] sm:$0xff]
  %v1266 = vld [vmem:[%s1255 + $0x50] sm:$0xff]
  %v1267 = vld [vmem:[%s1255 + $0x58] sm:$0xff]
  %v1268 = vld [vmem:[%s1255 + $0x60] sm:$0xff]
  %v1269 = vld [vmem:[%s1255 + $0x68] sm:$0xff]
  %v1270 = vld [vmem:[%s1255 + $0x70] sm:$0xff]
  %v1271 = vld [vmem:[%s1255 + $0x78] sm:$0xff]
  %v1272 = vlaneseq
  %v1273 = vshrl.u32 %v1272, 7
  %v1274 = vsub.s32 0, %v1273
  %v1275 = vrot.slane %v1238, %v1274
  %1276 = vmatprep.subr.mxu0 0.0
  %1277 = vmatpush1.msra.mxu0 %v1256
  %1278 = vmatprep.subr.mxu0 0.0
  %1279 = vmatpush1.msra.mxu0 %v1257
  %1280 = vmatprep.subr.mxu0 0.0
  %1281 = vmatpush1.msra.mxu0 %v1258
  %1282 = vmatprep.subr.mxu0 0.0
  %1283 = vmatpush1.msra.mxu0 %v1259
  %1284 = vmatprep.subr.mxu0 0.0
  %1285 = vmatpush1.msra.mxu0 %v1260
  %1286 = vmatprep.subr.mxu0 0.0
  %1287 = vmatpush1.msra.mxu0 %v1261
  %1288 = vmatprep.subr.mxu0 0.0
  %1289 = vmatpush1.msra.mxu0 %v1262
  %1290 = vmatprep.subr.mxu0 0.0
  %1291 = vmatpush1.msra.mxu0 %v1263
  %1292 = vmatprep.subr.mxu0 0.0
  %1293 = vmatpush1.msra.mxu0 %v1264
  %1294 = vmatprep.subr.mxu0 0.0
  %1295 = vmatpush1.msra.mxu0 %v1265
  %1296 = vmatprep.subr.mxu0 0.0
  %1297 = vmatpush1.msra.mxu0 %v1266
  %1298 = vmatprep.subr.mxu0 0.0
  %1299 = vmatpush1.msra.mxu0 %v1267
  %1300 = vmatprep.subr.mxu0 0.0
  %1301 = vmatpush1.msra.mxu0 %v1268
  %1302 = vmatprep.subr.mxu0 0.0
  %1303 = vmatpush1.msra.mxu0 %v1269
  %1304 = vmatprep.subr.mxu0 0.0
  %1305 = vmatpush1.msra.mxu0 %v1270
  %1306 = vmatprep.subr.mxu0 0.0
  %1307 = vmatpush1.msra.mxu0 %v1271
  %1308 = vmatprep.subr.mxu0 0.0
  %1309 = vmatpush1.msra.mxu0 0.0
  %1310 = vmatprep.subr.mxu0 0.0
  %1311 = vmatpush1.msra.mxu0 0.0
  %1312 = vmatprep.subr.mxu0 0.0
  %1313 = vmatpush1.msra.mxu0 0.0
  %1314 = vmatprep.subr.mxu0 0.0
  %1315 = vmatpush1.msra.mxu0 0.0
  %1316 = vmatprep.subr.mxu0 0.0
  %1317 = vmatpush1.msra.mxu0 0.0
  %1318 = vmatprep.subr.mxu0 0.0
  %1319 = vmatpush1.msra.mxu0 0.0
  %1320 = vmatprep.subr.mxu0 0.0
  %1321 = vmatpush1.msra.mxu0 0.0
  %1322 = vmatprep.subr.mxu0 0.0
  %1323 = vmatpush1.msra.mxu0 0.0
  %1324 = vmatprep.subr.mxu0 0.0
  %1325 = vmatpush1.msra.mxu0 0.0
  %1326 = vmatprep.subr.mxu0 0.0
  %1327 = vmatpush1.msra.mxu0 0.0
  %1328 = vmatprep.subr.mxu0 0.0
  %1329 = vmatpush1.msra.mxu0 0.0
  %1330 = vmatprep.subr.mxu0 0.0
  %1331 = vmatpush1.msra.mxu0 0.0
  %1332 = vmatprep.subr.mxu0 0.0
  %1333 = vmatpush1.msra.mxu0 0.0
  %1334 = vmatprep.subr.mxu0 0.0
  %1335 = vmatpush1.msra.mxu0 0.0
  %1336 = vmatprep.subr.mxu0 0.0
  %1337 = vmatpush1.msra.mxu0 0.0
  %1338 = vmatprep.subr.mxu0 0.0
  %1339 = vmatpush1.msra.mxu0 0.0
  %1340 = vmatprep.mubr.f32.mxu0 0.0
  %1341 = vmatmul.mubr.f32.gmra.mrb[0].mxu0 %v1239
  %v1342 = vpop.f32.mrb[0].mxu0
  %v1343 = vadd.f32 %v1275, %v1342
  %v1344 = vpop.f32.mrb[0].mxu0
  %1345 = vmatprep.mubr.f32.mxu0 0.0
  %1346 = vmatmul.mubr.f32.gmra.mrb[0].mxu0 %v1240
  %v1347 = vpop.f32.mrb[0].mxu0
  %v1348 = vadd.f32 %v1275, %v1347
  %v1349 = vpop.f32.mrb[0].mxu0
  %1350 = vmatprep.mubr.f32.mxu0 0.0
  %1351 = vmatmul.mubr.f32.gmra.mrb[0].mxu0 %v1241
  %v1352 = vpop.f32.mrb[0].mxu0
  %v1353 = vadd.f32 %v1275, %v1352
  %v1354 = vpop.f32.mrb[0].mxu0
  %1355 = vmatprep.mubr.f32.mxu0 0.0
  %1356 = vmatmul.mubr.f32.gmra.mrb[0].mxu0 %v1242
  %v1357 = vpop.f32.mrb[0].mxu0
  %v1358 = vadd.f32 %v1275, %v1357
  %v1359 = vpop.f32.mrb[0].mxu0
  %1360 = vmatprep.mubr.f32.mxu0 0.0
  %1361 = vmatmul.mubr.f32.gmra.mrb[0].mxu0 %v1243
  %v1362 = vpop.f32.mrb[0].mxu0
  %v1363 = vadd.f32 %v1275, %v1362
  %v1364 = vpop.f32.mrb[0].mxu0
  %1365 = vmatprep.mubr.f32.mxu0 0.0
  %1366 = vmatmul.mubr.f32.gmra.mrb[0].mxu0 %v1244
  %v1367 = vpop.f32.mrb[0].mxu0
  %v1368 = vadd.f32 %v1275, %v1367
  %v1369 = vpop.f32.mrb[0].mxu0
  %1370 = vmatprep.mubr.f32.mxu0 0.0
  %1371 = vmatmul.mubr.f32.gmra.mrb[0].mxu0 %v1245
  %v1372 = vpop.f32.mrb[0].mxu0
  %v1373 = vadd.f32 %v1275, %v1372
  %v1374 = vpop.f32.mrb[0].mxu0
  %1375 = vmatprep.mubr.f32.mxu0 0.0
  %1376 = vmatmul.mubr.f32.gmra.mrb[0].mxu0 %v1246
  %v1377 = vpop.f32.mrb[0].mxu0
  %v1378 = vadd.f32 %v1275, %v1377
  %v1379 = vpop.f32.mrb[0].mxu0
  %1380 = vmatprep.mubr.f32.mxu0 0.0
  %1381 = vmatmul.mubr.f32.gmra.mrb[0].mxu0 %v1247
  %v1382 = vpop.f32.mrb[0].mxu0
  %v1383 = vadd.f32 %v1275, %v1382
  %v1384 = vpop.f32.mrb[0].mxu0
  %1385 = vmatprep.mubr.f32.mxu0 0.0
  %1386 = vmatmul.mubr.f32.gmra.mrb[0].mxu0 %v1248
  %v1387 = vpop.f32.mrb[0].mxu0
  %v1388 = vadd.f32 %v1275, %v1387
  %v1389 = vpop.f32.mrb[0].mxu0
  %1390 = vmatprep.mubr.f32.mxu0 0.0
  %1391 = vmatmul.mubr.f32.gmra.mrb[0].mxu0 %v1249
  %v1392 = vpop.f32.mrb[0].mxu0
  %v1393 = vadd.f32 %v1275, %v1392
  %v1394 = vpop.f32.mrb[0].mxu0
  %1395 = vmatprep.mubr.f32.mxu0 0.0
  %1396 = vmatmul.mubr.f32.gmra.mrb[0].mxu0 %v1250
  %v1397 = vpop.f32.mrb[0].mxu0
  %v1398 = vadd.f32 %v1275, %v1397
  %v1399 = vpop.f32.mrb[0].mxu0
  %1400 = vmatprep.mubr.f32.mxu0 0.0
  %1401 = vmatmul.mubr.f32.gmra.mrb[0].mxu0 %v1251
  %v1402 = vpop.f32.mrb[0].mxu0
  %v1403 = vadd.f32 %v1275, %v1402
  %v1404 = vpop.f32.mrb[0].mxu0
  %1405 = vmatprep.mubr.f32.mxu0 0.0
  %1406 = vmatmul.mubr.f32.gmra.mrb[0].mxu0 %v1252
  %v1407 = vpop.f32.mrb[0].mxu0
  %v1408 = vadd.f32 %v1275, %v1407
  %v1409 = vpop.f32.mrb[0].mxu0
  %1410 = vmatprep.mubr.f32.mxu0 0.0
  %1411 = vmatmul.mubr.f32.gmra.mrb[0].mxu0 %v1253
  %v1412 = vpop.f32.mrb[0].mxu0
  %v1413 = vadd.f32 %v1275, %v1412
  %v1414 = vpop.f32.mrb[0].mxu0
  %1415 = vmatprep.mubr.f32.mxu0 0.0
  %1416 = vmatmul.mubr.f32.gmra.mrb[0].mxu0 %v1254
  %v1417 = vpop.f32.mrb[0].mxu0
  %v1418 = vadd.f32 %v1275, %v1417
  %v1419 = vpop.f32.mrb[0].mxu0
  %1420 = vdwg.mxu0
  %v1421 = vmul.f32 %v1343, %v660
  %v1422 = vmul.f32 %v1348, %v661
  %v1423 = vmul.f32 %v1353, %v662
  %v1424 = vmul.f32 %v1358, %v663
  %v1425 = vmul.f32 %v1363, %v664
  %v1426 = vmul.f32 %v1368, %v665
  %v1427 = vmul.f32 %v1373, %v666
  %v1428 = vmul.f32 %v1378, %v667
  %v1429 = vmul.f32 %v1383, %v668
  %v1430 = vmul.f32 %v1388, %v669
  %v1431 = vmul.f32 %v1393, %v670
  %v1432 = vmul.f32 %v1398, %v671
  %v1433 = vmul.f32 %v1403, %v672
  %v1434 = vmul.f32 %v1408, %v673
  %v1435 = vmul.f32 %v1413, %v674
  %v1436 = vmul.f32 %v1418, %v675
  %v1437 = vadd.f32 %v1421, %v1422
  %v1438 = vadd.f32 %v1437, %v1423
  %v1439 = vadd.f32 %v1438, %v1424
  %v1440 = vadd.f32 %v1439, %v1425
  %v1441 = vadd.f32 %v1440, %v1426
  %v1442 = vadd.f32 %v1441, %v1427
  %v1443 = vadd.f32 %v1442, %v1428
  %v1444 = vadd.f32 %v1443, %v1429
  %v1445 = vadd.f32 %v1444, %v1430
  %v1446 = vadd.f32 %v1445, %v1431
  %v1447 = vadd.f32 %v1446, %v1432
  %v1448 = vadd.f32 %v1447, %v1433
  %v1449 = vadd.f32 %v1448, %v1434
  %v1450 = vadd.f32 %v1449, %v1435
  %v1451 = vadd.f32 %v1450, %v1436
  %v1452 = vrot.slane %v1451, 4
  %v1453 = vadd.f32 %v1451, %v1452
  %v1454 = vrot.slane %v1453, 2
  %v1455 = vadd.f32 %v1453, %v1454
  %v1456 = vrot.slane %v1455, 1
  %v1457 = vadd.f32 %v1455, %v1456
  %v1458 = vmul.f32 %v1457, 0.03125
  %v1459 = vsub.f32 %v1343, %v1458
  %v1460 = vsub.f32 %v1348, %v1458
  %v1461 = vsub.f32 %v1353, %v1458
  %v1462 = vsub.f32 %v1358, %v1458
  %v1463 = vsub.f32 %v1363, %v1458
  %v1464 = vsub.f32 %v1368, %v1458
  %v1465 = vsub.f32 %v1373, %v1458
  %v1466 = vsub.f32 %v1378, %v1458
  %v1467 = vsub.f32 %v1383, %v1458
  %v1468 = vsub.f32 %v1388, %v1458
  %v1469 = vsub.f32 %v1393, %v1458
  %v1470 = vsub.f32 %v1398, %v1458
  %v1471 = vsub.f32 %v1403, %v1458
  %v1472 = vsub.f32 %v1408, %v1458
  %v1473 = vsub.f32 %v1413, %v1458
  %v1474 = vsub.f32 %v1418, %v1458
  %v1475 = vmul.f32 %v1459, %v1459
  %v1476 = vmul.f32 %v1460, %v1460
  %v1477 = vmul.f32 %v1461, %v1461
  %v1478 = vmul.f32 %v1462, %v1462
  %v1479 = vmul.f32 %v1463, %v1463
  %v1480 = vmul.f32 %v1464, %v1464
  %v1481 = vmul.f32 %v1465, %v1465
  %v1482 = vmul.f32 %v1466, %v1466
  %v1483 = vmul.f32 %v1467, %v1467
  %v1484 = vmul.f32 %v1468, %v1468
  %v1485 = vmul.f32 %v1469, %v1469
  %v1486 = vmul.f32 %v1470, %v1470
  %v1487 = vmul.f32 %v1471, %v1471
  %v1488 = vmul.f32 %v1472, %v1472
  %v1489 = vmul.f32 %v1473, %v1473
  %v1490 = vmul.f32 %v1474, %v1474
  %v1491 = vmul.f32 %v1475, %v660
  %v1492 = vmul.f32 %v1476, %v661
  %v1493 = vmul.f32 %v1477, %v662
  %v1494 = vmul.f32 %v1478, %v663
  %v1495 = vmul.f32 %v1479, %v664
  %v1496 = vmul.f32 %v1480, %v665
  %v1497 = vmul.f32 %v1481, %v666
  %v1498 = vmul.f32 %v1482, %v667
  %v1499 = vmul.f32 %v1483, %v668
  %v1500 = vmul.f32 %v1484, %v669
  %v1501 = vmul.f32 %v1485, %v670
  %v1502 = vmul.f32 %v1486, %v671
  %v1503 = vmul.f32 %v1487, %v672
  %v1504 = vmul.f32 %v1488, %v673
  %v1505 = vmul.f32 %v1489, %v674
  %v1506 = vmul.f32 %v1490, %v675
  %v1507 = vadd.f32 %v1491, %v1492
  %v1508 = vadd.f32 %v1507, %v1493
  %v1509 = vadd.f32 %v1508, %v1494
  %v1510 = vadd.f32 %v1509, %v1495
  %v1511 = vadd.f32 %v1510, %v1496
  %v1512 = vadd.f32 %v1511, %v1497
  %v1513 = vadd.f32 %v1512, %v1498
  %v1514 = vadd.f32 %v1513, %v1499
  %v1515 = vadd.f32 %v1514, %v1500
  %v1516 = vadd.f32 %v1515, %v1501
  %v1517 = vadd.f32 %v1516, %v1502
  %v1518 = vadd.f32 %v1517, %v1503
  %v1519 = vadd.f32 %v1518, %v1504
  %v1520 = vadd.f32 %v1519, %v1505
  %v1521 = vadd.f32 %v1520, %v1506
  %v1522 = vrot.slane %v1521, 4
  %v1523 = vadd.f32 %v1521, %v1522
  %v1524 = vrot.slane %v1523, 2
  %v1525 = vadd.f32 %v1523, %v1524
  %v1526 = vrot.slane %v1525, 1
  %v1527 = vadd.f32 %v1525, %v1526
  %v1528 = vmul.f32 %v1527, 0.03125
  %v1529 = vadd.f32 %v1528, 1e-05
  %v1530 = vrsqrt.pop %v1529
  %v1531 = vmul.f32 %v1459, %v1530
  %v1532 = vmul.f32 %v1460, %v1530
  %v1533 = vmul.f32 %v1461, %v1530
  %v1534 = vmul.f32 %v1462, %v1530
  %v1535 = vmul.f32 %v1463, %v1530
  %v1536 = vmul.f32 %v1464, %v1530
  %v1537 = vmul.f32 %v1465, %v1530
  %v1538 = vmul.f32 %v1466, %v1530
  %v1539 = vmul.f32 %v1467, %v1530
  %v1540 = vmul.f32 %v1468, %v1530
  %v1541 = vmul.f32 %v1469, %v1530
  %v1542 = vmul.f32 %v1470, %v1530
  %v1543 = vmul.f32 %v1471, %v1530
  %v1544 = vmul.f32 %v1472, %v1530
  %v1545 = vmul.f32 %v1473, %v1530
  %v1546 = vmul.f32 %v1474, %v1530
  %v1547 = vlaneseq
  %v1548 = vshrl.u32 %v1547, 7
  %v1549 = vsub.s32 1, %v1548
  %v1550 = vrot.slane %v1238, %v1549
  %v1551 = vmul.f32 %v1531, %v1550
  %v1552 = vmul.f32 %v1532, %v1550
  %v1553 = vmul.f32 %v1533, %v1550
  %v1554 = vmul.f32 %v1534, %v1550
  %v1555 = vmul.f32 %v1535, %v1550
  %v1556 = vmul.f32 %v1536, %v1550
  %v1557 = vmul.f32 %v1537, %v1550
  %v1558 = vmul.f32 %v1538, %v1550
  %v1559 = vmul.f32 %v1539, %v1550
  %v1560 = vmul.f32 %v1540, %v1550
  %v1561 = vmul.f32 %v1541, %v1550
  %v1562 = vmul.f32 %v1542, %v1550
  %v1563 = vmul.f32 %v1543, %v1550
  %v1564 = vmul.f32 %v1544, %v1550
  %v1565 = vmul.f32 %v1545, %v1550
  %v1566 = vmul.f32 %v1546, %v1550
  %v1567 = vlaneseq
  %v1568 = vshrl.u32 %v1567, 7
  %v1569 = vsub.s32 2, %v1568
  %v1570 = vrot.slane %v1238, %v1569
  %v1571 = vadd.f32 %v1551, %v1570
  %v1572 = vadd.f32 %v1552, %v1570
  %v1573 = vadd.f32 %v1553, %v1570
  %v1574 = vadd.f32 %v1554, %v1570
  %v1575 = vadd.f32 %v1555, %v1570
  %v1576 = vadd.f32 %v1556, %v1570
  %v1577 = vadd.f32 %v1557, %v1570
  %v1578 = vadd.f32 %v1558, %v1570
  %v1579 = vadd.f32 %v1559, %v1570
  %v1580 = vadd.f32 %v1560, %v1570
  %v1581 = vadd.f32 %v1561, %v1570
  %v1582 = vadd.f32 %v1562, %v1570
  %v1583 = vadd.f32 %v1563, %v1570
  %v1584 = vadd.f32 %v1564, %v1570
  %v1585 = vadd.f32 %v1565, %v1570
  %v1586 = vadd.f32 %v1566, %v1570
  %v1587 = vmax.f32 %v1571, 0.0
  %v1588 = vmax.f32 %v1572, 0.0
  %v1589 = vmax.f32 %v1573, 0.0
  %v1590 = vmax.f32 %v1574, 0.0
  %v1591 = vmax.f32 %v1575, 0.0
  %v1592 = vmax.f32 %v1576, 0.0
  %v1593 = vmax.f32 %v1577, 0.0
  %v1594 = vmax.f32 %v1578, 0.0
  %v1595 = vmax.f32 %v1579, 0.0
  %v1596 = vmax.f32 %v1580, 0.0
  %v1597 = vmax.f32 %v1581, 0.0
  %v1598 = vmax.f32 %v1582, 0.0
  %v1599 = vmax.f32 %v1583, 0.0
  %v1600 = vmax.f32 %v1584, 0.0
  %v1601 = vmax.f32 %v1585, 0.0
  %v1602 = vmax.f32 %v1586, 0.0
  %s1603 = scalar_lea.vmem %s6, 128
  %v1604 = vld [vmem:[%s1603] sm:$0xff]
  %v1605 = vld [vmem:[%s1603 + $0x8] sm:$0xff]
  %v1606 = vld [vmem:[%s1603 + $0x10] sm:$0xff]
  %v1607 = vld [vmem:[%s1603 + $0x18] sm:$0xff]
  %v1608 = vld [vmem:[%s1603 + $0x20] sm:$0xff]
  %v1609 = vld [vmem:[%s1603 + $0x28] sm:$0xff]
  %v1610 = vld [vmem:[%s1603 + $0x30] sm:$0xff]
  %v1611 = vld [vmem:[%s1603 + $0x38] sm:$0xff]
  %v1612 = vld [vmem:[%s1603 + $0x40] sm:$0xff]
  %v1613 = vld [vmem:[%s1603 + $0x48] sm:$0xff]
  %v1614 = vld [vmem:[%s1603 + $0x50] sm:$0xff]
  %v1615 = vld [vmem:[%s1603 + $0x58] sm:$0xff]
  %v1616 = vld [vmem:[%s1603 + $0x60] sm:$0xff]
  %v1617 = vld [vmem:[%s1603 + $0x68] sm:$0xff]
  %v1618 = vld [vmem:[%s1603 + $0x70] sm:$0xff]
  %v1619 = vld [vmem:[%s1603 + $0x78] sm:$0xff]
  %1620 = vmatprep.subr.mxu0 0.0
  %1621 = vmatpush1.msra.mxu0 %v1604
  %1622 = vmatprep.subr.mxu0 0.0
  %1623 = vmatpush1.msra.mxu0 %v1605
  %1624 = vmatprep.subr.mxu0 0.0
  %1625 = vmatpush1.msra.mxu0 %v1606
  %1626 = vmatprep.subr.mxu0 0.0
  %1627 = vmatpush1.msra.mxu0 %v1607
  %1628 = vmatprep.subr.mxu0 0.0
  %1629 = vmatpush1.msra.mxu0 %v1608
  %1630 = vmatprep.subr.mxu0 0.0
  %1631 = vmatpush1.msra.mxu0 %v1609
  %1632 = vmatprep.subr.mxu0 0.0
  %1633 = vmatpush1.msra.mxu0 %v1610
  %1634 = vmatprep.subr.mxu0 0.0
  %1635 = vmatpush1.msra.mxu0 %v1611
  %1636 = vmatprep.subr.mxu0 0.0
  %1637 = vmatpush1.msra.mxu0 %v1612
  %1638 = vmatprep.subr.mxu0 0.0
  %1639 = vmatpush1.msra.mxu0 %v1613
  %1640 = vmatprep.subr.mxu0 0.0
  %1641 = vmatpush1.msra.mxu0 %v1614
  %1642 = vmatprep.subr.mxu0 0.0
  %1643 = vmatpush1.msra.mxu0 %v1615
  %1644 = vmatprep.subr.mxu0 0.0
  %1645 = vmatpush1.msra.mxu0 %v1616
  %1646 = vmatprep.subr.mxu0 0.0
  %1647 = vmatpush1.msra.mxu0 %v1617
  %1648 = vmatprep.subr.mxu0 0.0
  %1649 = vmatpush1.msra.mxu0 %v1618
  %1650 = vmatprep.subr.mxu0 0.0
  %1651 = vmatpush1.msra.mxu0 %v1619
  %1652 = vmatprep.subr.mxu0 0.0
  %1653 = vmatpush1.msra.mxu0 0.0
  %1654 = vmatprep.subr.mxu0 0.0
  %1655 = vmatpush1.msra.mxu0 0.0
  %1656 = vmatprep.subr.mxu0 0.0
  %1657 = vmatpush1.msra.mxu0 0.0
  %1658 = vmatprep.subr.mxu0 0.0
  %1659 = vmatpush1.msra.mxu0 0.0
  %1660 = vmatprep.subr.mxu0 0.0
  %1661 = vmatpush1.msra.mxu0 0.0
  %1662 = vmatprep.subr.mxu0 0.0
  %1663 = vmatpush1.msra.mxu0 0.0
  %1664 = vmatprep.subr.mxu0 0.0
  %1665 = vmatpush1.msra.mxu0 0.0
  %1666 = vmatprep.subr.mxu0 0.0
  %1667 = vmatpush1.msra.mxu0 0.0
  %1668 = vmatprep.subr.mxu0 0.0
  %1669 = vmatpush1.msra.mxu0 0.0
  %1670 = vmatprep.subr.mxu0 0.0
  %1671 = vmatpush1.msra.mxu0 0.0
  %1672 = vmatprep.subr.mxu0 0.0
  %1673 = vmatpush1.msra.mxu0 0.0
  %1674 = vmatprep.subr.mxu0 0.0
  %1675 = vmatpush1.msra.mxu0 0.0
  %1676 = vmatprep.subr.mxu0 0.0
  %1677 = vmatpush1.msra.mxu0 0.0
  %1678 = vmatprep.subr.mxu0 0.0
  %1679 = vmatpush1.msra.mxu0 0.0
  %1680 = vmatprep.subr.mxu0 0.0
  %1681 = vmatpush1.msra.mxu0 0.0
  %1682 = vmatprep.subr.mxu0 0.0
  %1683 = vmatpush1.msra.mxu0 0.0
  %1684 = vmatprep.mubr.f32.mxu0 0.0
  %1685 = vmatmul.mubr.f32.gmra.mrb[0].mxu0 %v1587
  %v1686 = vpop.f32.mrb[0].mxu0
  %v1687 = vadd.f32 0.0, %v1686
  %v1688 = vpop.f32.mrb[0].mxu0
  %1689 = vmatprep.mubr.f32.mxu0 0.0
  %1690 = vmatmul.mubr.f32.gmra.mrb[0].mxu0 %v1588
  %v1691 = vpop.f32.mrb[0].mxu0
  %v1692 = vadd.f32 0.0, %v1691
  %v1693 = vpop.f32.mrb[0].mxu0
  %1694 = vmatprep.mubr.f32.mxu0 0.0
  %1695 = vmatmul.mubr.f32.gmra.mrb[0].mxu0 %v1589
  %v1696 = vpop.f32.mrb[0].mxu0
  %v1697 = vadd.f32 0.0, %v1696
  %v1698 = vpop.f32.mrb[0].mxu0
  %1699 = vmatprep.mubr.f32.mxu0 0.0
  %1700 = vmatmul.mubr.f32.gmra.mrb[0].mxu0 %v1590
  %v1701 = vpop.f32.mrb[0].mxu0
  %v1702 = vadd.f32 0.0, %v1701
  %v1703 = vpop.f32.mrb[0].mxu0
  %1704 = vmatprep.mubr.f32.mxu0 0.0
  %1705 = vmatmul.mubr.f32.gmra.mrb[0].mxu0 %v1591
  %v1706 = vpop.f32.mrb[0].mxu0
  %v1707 = vadd.f32 0.0, %v1706
  %v1708 = vpop.f32.mrb[0].mxu0
  %1709 = vmatprep.mubr.f32.mxu0 0.0
  %1710 = vmatmul.mubr.f32.gmra.mrb[0].mxu0 %v1592
  %v1711 = vpop.f32.mrb[0].mxu0
  %v1712 = vadd.f32 0.0, %v1711
  %v1713 = vpop.f32.mrb[0].mxu0
  %1714 = vmatprep.mubr.f32.mxu0 0.0
  %1715 = vmatmul.mubr.f32.gmra.mrb[0].mxu0 %v1593
  %v1716 = vpop.f32.mrb[0].mxu0
  %v1717 = vadd.f32 0.0, %v1716
  %v1718 = vpop.f32.mrb[0].mxu0
  %1719 = vmatprep.mubr.f32.mxu0 0.0
  %1720 = vmatmul.mubr.f32.gmra.mrb[0].mxu0 %v1594
  %v1721 = vpop.f32.mrb[0].mxu0
  %v1722 = vadd.f32 0.0, %v1721
  %v1723 = vpop.f32.mrb[0].mxu0
  %1724 = vmatprep.mubr.f32.mxu0 0.0
  %1725 = vmatmul.mubr.f32.gmra.mrb[0].mxu0 %v1595
  %v1726 = vpop.f32.mrb[0].mxu0
  %v1727 = vadd.f32 0.0, %v1726
  %v1728 = vpop.f32.mrb[0].mxu0
  %1729 = vmatprep.mubr.f32.mxu0 0.0
  %1730 = vmatmul.mubr.f32.gmra.mrb[0].mxu0 %v1596
  %v1731 = vpop.f32.mrb[0].mxu0
  %v1732 = vadd.f32 0.0, %v1731
  %v1733 = vpop.f32.mrb[0].mxu0
  %1734 = vmatprep.mubr.f32.mxu0 0.0
  %1735 = vmatmul.mubr.f32.gmra.mrb[0].mxu0 %v1597
  %v1736 = vpop.f32.mrb[0].mxu0
  %v1737 = vadd.f32 0.0, %v1736
  %v1738 = vpop.f32.mrb[0].mxu0
  %1739 = vmatprep.mubr.f32.mxu0 0.0
  %1740 = vmatmul.mubr.f32.gmra.mrb[0].mxu0 %v1598
  %v1741 = vpop.f32.mrb[0].mxu0
  %v1742 = vadd.f32 0.0, %v1741
  %v1743 = vpop.f32.mrb[0].mxu0
  %1744 = vmatprep.mubr.f32.mxu0 0.0
  %1745 = vmatmul.mubr.f32.gmra.mrb[0].mxu0 %v1599
  %v1746 = vpop.f32.mrb[0].mxu0
  %v1747 = vadd.f32 0.0, %v1746
  %v1748 = vpop.f32.mrb[0].mxu0
  %1749 = vmatprep.mubr.f32.mxu0 0.0
  %1750 = vmatmul.mubr.f32.gmra.mrb[0].mxu0 %v1600
  %v1751 = vpop.f32.mrb[0].mxu0
  %v1752 = vadd.f32 0.0, %v1751
  %v1753 = vpop.f32.mrb[0].mxu0
  %1754 = vmatprep.mubr.f32.mxu0 0.0
  %1755 = vmatmul.mubr.f32.gmra.mrb[0].mxu0 %v1601
  %v1756 = vpop.f32.mrb[0].mxu0
  %v1757 = vadd.f32 0.0, %v1756
  %v1758 = vpop.f32.mrb[0].mxu0
  %1759 = vmatprep.mubr.f32.mxu0 0.0
  %1760 = vmatmul.mubr.f32.gmra.mrb[0].mxu0 %v1602
  %v1761 = vpop.f32.mrb[0].mxu0
  %v1762 = vadd.f32 0.0, %v1761
  %v1763 = vpop.f32.mrb[0].mxu0
  %1764 = vdwg.mxu0
  %v1765 = vadd.f32 %v1221, %v1687
  %v1766 = vadd.f32 %v1222, %v1692
  %v1767 = vadd.f32 %v1223, %v1697
  %v1768 = vadd.f32 %v1224, %v1702
  %v1769 = vadd.f32 %v1225, %v1707
  %v1770 = vadd.f32 %v1226, %v1712
  %v1771 = vadd.f32 %v1227, %v1717
  %v1772 = vadd.f32 %v1228, %v1722
  %v1773 = vadd.f32 %v1229, %v1727
  %v1774 = vadd.f32 %v1230, %v1732
  %v1775 = vadd.f32 %v1231, %v1737
  %v1776 = vadd.f32 %v1232, %v1742
  %v1777 = vadd.f32 %v1233, %v1747
  %v1778 = vadd.f32 %v1234, %v1752
  %v1779 = vadd.f32 %v1235, %v1757
  %v1780 = vadd.f32 %v1236, %v1762
  %v1781 = vlaneseq
  %v1782 = vshrl.u32 %v1781, 7
  %v1783 = vsub.s32 3, %v1782
  %v1784 = vrot.slane %v1238, %v1783
  %v1785 = vadd.f32 %v1765, %v1784
  %v1786 = vadd.f32 %v1766, %v1784
  %v1787 = vadd.f32 %v1767, %v1784
  %v1788 = vadd.f32 %v1768, %v1784
  %v1789 = vadd.f32 %v1769, %v1784
  %v1790 = vadd.f32 %v1770, %v1784
  %v1791 = vadd.f32 %v1771, %v1784
  %v1792 = vadd.f32 %v1772, %v1784
  %v1793 = vadd.f32 %v1773, %v1784
  %v1794 = vadd.f32 %v1774, %v1784
  %v1795 = vadd.f32 %v1775, %v1784
  %v1796 = vadd.f32 %v1776, %v1784
  %v1797 = vadd.f32 %v1777, %v1784
  %v1798 = vadd.f32 %v1778, %v1784
  %v1799 = vadd.f32 %v1779, %v1784
  %v1800 = vadd.f32 %v1780, %v1784
  %s1801 = scalar_lea.vmem %s5, 8
  %v1802 = vld [vmem:[%s1801] sm:$0xf]
  %v1803 = vadd.f32 %v26, %v533
  %v1804 = vadd.f32 %v27, %v538
  %v1805 = vadd.f32 %v28, %v543
  %v1806 = vadd.f32 %v29, %v548
  %v1807 = vadd.f32 %v30, %v553
  %v1808 = vadd.f32 %v31, %v558
  %v1809 = vadd.f32 %v32, %v563
  %v1810 = vadd.f32 %v33, %v568
  %v1811 = vadd.f32 %v34, %v573
  %v1812 = vadd.f32 %v35, %v578
  %v1813 = vadd.f32 %v36, %v583
  %v1814 = vadd.f32 %v37, %v588
  %v1815 = vadd.f32 %v38, %v593
  %v1816 = vadd.f32 %v39, %v598
  %v1817 = vadd.f32 %v40, %v603
  %v1818 = vadd.f32 %v41, %v608
  %s1819 = scalar_lea.vmem %s4, 256
  %v1820 = vld [vmem:[%s1819] sm:$0xff]
  %v1821 = vld [vmem:[%s1819 + $0x8] sm:$0xff]
  %v1822 = vld [vmem:[%s1819 + $0x10] sm:$0xff]
  %v1823 = vld [vmem:[%s1819 + $0x18] sm:$0xff]
  %v1824 = vld [vmem:[%s1819 + $0x20] sm:$0xff]
  %v1825 = vld [vmem:[%s1819 + $0x28] sm:$0xff]
  %v1826 = vld [vmem:[%s1819 + $0x30] sm:$0xff]
  %v1827 = vld [vmem:[%s1819 + $0x38] sm:$0xff]
  %v1828 = vld [vmem:[%s1819 + $0x40] sm:$0xff]
  %v1829 = vld [vmem:[%s1819 + $0x48] sm:$0xff]
  %v1830 = vld [vmem:[%s1819 + $0x50] sm:$0xff]
  %v1831 = vld [vmem:[%s1819 + $0x58] sm:$0xff]
  %v1832 = vld [vmem:[%s1819 + $0x60] sm:$0xff]
  %v1833 = vld [vmem:[%s1819 + $0x68] sm:$0xff]
  %v1834 = vld [vmem:[%s1819 + $0x70] sm:$0xff]
  %v1835 = vld [vmem:[%s1819 + $0x78] sm:$0xff]
  %v1836 = vlaneseq
  %v1837 = vshrl.u32 %v1836, 7
  %v1838 = vsub.s32 0, %v1837
  %v1839 = vrot.slane %v1802, %v1838
  %1840 = vmatprep.subr.mxu0 0.0
  %1841 = vmatpush1.msra.mxu0 %v1820
  %1842 = vmatprep.subr.mxu0 0.0
  %1843 = vmatpush1.msra.mxu0 %v1821
  %1844 = vmatprep.subr.mxu0 0.0
  %1845 = vmatpush1.msra.mxu0 %v1822
  %1846 = vmatprep.subr.mxu0 0.0
  %1847 = vmatpush1.msra.mxu0 %v1823
  %1848 = vmatprep.subr.mxu0 0.0
  %1849 = vmatpush1.msra.mxu0 %v1824
  %1850 = vmatprep.subr.mxu0 0.0
  %1851 = vmatpush1.msra.mxu0 %v1825
  %1852 = vmatprep.subr.mxu0 0.0
  %1853 = vmatpush1.msra.mxu0 %v1826
  %1854 = vmatprep.subr.mxu0 0.0
  %1855 = vmatpush1.msra.mxu0 %v1827
  %1856 = vmatprep.subr.mxu0 0.0
  %1857 = vmatpush1.msra.mxu0 %v1828
  %1858 = vmatprep.subr.mxu0 0.0
  %1859 = vmatpush1.msra.mxu0 %v1829
  %1860 = vmatprep.subr.mxu0 0.0
  %1861 = vmatpush1.msra.mxu0 %v1830
  %1862 = vmatprep.subr.mxu0 0.0
  %1863 = vmatpush1.msra.mxu0 %v1831
  %1864 = vmatprep.subr.mxu0 0.0
  %1865 = vmatpush1.msra.mxu0 %v1832
  %1866 = vmatprep.subr.mxu0 0.0
  %1867 = vmatpush1.msra.mxu0 %v1833
  %1868 = vmatprep.subr.mxu0 0.0
  %1869 = vmatpush1.msra.mxu0 %v1834
  %1870 = vmatprep.subr.mxu0 0.0
  %1871 = vmatpush1.msra.mxu0 %v1835
  %1872 = vmatprep.subr.mxu0 0.0
  %1873 = vmatpush1.msra.mxu0 0.0
  %1874 = vmatprep.subr.mxu0 0.0
  %1875 = vmatpush1.msra.mxu0 0.0
  %1876 = vmatprep.subr.mxu0 0.0
  %1877 = vmatpush1.msra.mxu0 0.0
  %1878 = vmatprep.subr.mxu0 0.0
  %1879 = vmatpush1.msra.mxu0 0.0
  %1880 = vmatprep.subr.mxu0 0.0
  %1881 = vmatpush1.msra.mxu0 0.0
  %1882 = vmatprep.subr.mxu0 0.0
  %1883 = vmatpush1.msra.mxu0 0.0
  %1884 = vmatprep.subr.mxu0 0.0
  %1885 = vmatpush1.msra.mxu0 0.0
  %1886 = vmatprep.subr.mxu0 0.0
  %1887 = vmatpush1.msra.mxu0 0.0
  %1888 = vmatprep.subr.mxu0 0.0
  %1889 = vmatpush1.msra.mxu0 0.0
  %1890 = vmatprep.subr.mxu0 0.0
  %1891 = vmatpush1.msra.mxu0 0.0
  %1892 = vmatprep.subr.mxu0 0.0
  %1893 = vmatpush1.msra.mxu0 0.0
  %1894 = vmatprep.subr.mxu0 0.0
  %1895 = vmatpush1.msra.mxu0 0.0
  %1896 = vmatprep.subr.mxu0 0.0
  %1897 = vmatpush1.msra.mxu0 0.0
  %1898 = vmatprep.subr.mxu0 0.0
  %1899 = vmatpush1.msra.mxu0 0.0
  %1900 = vmatprep.subr.mxu0 0.0
  %1901 = vmatpush1.msra.mxu0 0.0
  %1902 = vmatprep.subr.mxu0 0.0
  %1903 = vmatpush1.msra.mxu0 0.0
  %1904 = vmatprep.mubr.f32.mxu0 0.0
  %1905 = vmatmul.mubr.f32.gmra.mrb[0].mxu0 %v1803
  %v1906 = vpop.f32.mrb[0].mxu0
  %v1907 = vadd.f32 %v1839, %v1906
  %v1908 = vpop.f32.mrb[0].mxu0
  %1909 = vmatprep.mubr.f32.mxu0 0.0
  %1910 = vmatmul.mubr.f32.gmra.mrb[0].mxu0 %v1804
  %v1911 = vpop.f32.mrb[0].mxu0
  %v1912 = vadd.f32 %v1839, %v1911
  %v1913 = vpop.f32.mrb[0].mxu0
  %1914 = vmatprep.mubr.f32.mxu0 0.0
  %1915 = vmatmul.mubr.f32.gmra.mrb[0].mxu0 %v1805
  %v1916 = vpop.f32.mrb[0].mxu0
  %v1917 = vadd.f32 %v1839, %v1916
  %v1918 = vpop.f32.mrb[0].mxu0
  %1919 = vmatprep.mubr.f32.mxu0 0.0
  %1920 = vmatmul.mubr.f32.gmra.mrb[0].mxu0 %v1806
  %v1921 = vpop.f32.mrb[0].mxu0
  %v1922 = vadd.f32 %v1839, %v1921
  %v1923 = vpop.f32.mrb[0].mxu0
  %1924 = vmatprep.mubr.f32.mxu0 0.0
  %1925 = vmatmul.mubr.f32.gmra.mrb[0].mxu0 %v1807
  %v1926 = vpop.f32.mrb[0].mxu0
  %v1927 = vadd.f32 %v1839, %v1926
  %v1928 = vpop.f32.mrb[0].mxu0
  %1929 = vmatprep.mubr.f32.mxu0 0.0
  %1930 = vmatmul.mubr.f32.gmra.mrb[0].mxu0 %v1808
  %v1931 = vpop.f32.mrb[0].mxu0
  %v1932 = vadd.f32 %v1839, %v1931
  %v1933 = vpop.f32.mrb[0].mxu0
  %1934 = vmatprep.mubr.f32.mxu0 0.0
  %1935 = vmatmul.mubr.f32.gmra.mrb[0].mxu0 %v1809
  %v1936 = vpop.f32.mrb[0].mxu0
  %v1937 = vadd.f32 %v1839, %v1936
  %v1938 = vpop.f32.mrb[0].mxu0
  %1939 = vmatprep.mubr.f32.mxu0 0.0
  %1940 = vmatmul.mubr.f32.gmra.mrb[0].mxu0 %v1810
  %v1941 = vpop.f32.mrb[0].mxu0
  %v1942 = vadd.f32 %v1839, %v1941
  %v1943 = vpop.f32.mrb[0].mxu0
  %1944 = vmatprep.mubr.f32.mxu0 0.0
  %1945 = vmatmul.mubr.f32.gmra.mrb[0].mxu0 %v1811
  %v1946 = vpop.f32.mrb[0].mxu0
  %v1947 = vadd.f32 %v1839, %v1946
  %v1948 = vpop.f32.mrb[0].mxu0
  %1949 = vmatprep.mubr.f32.mxu0 0.0
  %1950 = vmatmul.mubr.f32.gmra.mrb[0].mxu0 %v1812
  %v1951 = vpop.f32.mrb[0].mxu0
  %v1952 = vadd.f32 %v1839, %v1951
  %v1953 = vpop.f32.mrb[0].mxu0
  %1954 = vmatprep.mubr.f32.mxu0 0.0
  %1955 = vmatmul.mubr.f32.gmra.mrb[0].mxu0 %v1813
  %v1956 = vpop.f32.mrb[0].mxu0
  %v1957 = vadd.f32 %v1839, %v1956
  %v1958 = vpop.f32.mrb[0].mxu0
  %1959 = vmatprep.mubr.f32.mxu0 0.0
  %1960 = vmatmul.mubr.f32.gmra.mrb[0].mxu0 %v1814
  %v1961 = vpop.f32.mrb[0].mxu0
  %v1962 = vadd.f32 %v1839, %v1961
  %v1963 = vpop.f32.mrb[0].mxu0
  %1964 = vmatprep.mubr.f32.mxu0 0.0
  %1965 = vmatmul.mubr.f32.gmra.mrb[0].mxu0 %v1815
  %v1966 = vpop.f32.mrb[0].mxu0
  %v1967 = vadd.f32 %v1839, %v1966
  %v1968 = vpop.f32.mrb[0].mxu0
  %1969 = vmatprep.mubr.f32.mxu0 0.0
  %1970 = vmatmul.mubr.f32.gmra.mrb[0].mxu0 %v1816
  %v1971 = vpop.f32.mrb[0].mxu0
  %v1972 = vadd.f32 %v1839, %v1971
  %v1973 = vpop.f32.mrb[0].mxu0
  %1974 = vmatprep.mubr.f32.mxu0 0.0
  %1975 = vmatmul.mubr.f32.gmra.mrb[0].mxu0 %v1817
  %v1976 = vpop.f32.mrb[0].mxu0
  %v1977 = vadd.f32 %v1839, %v1976
  %v1978 = vpop.f32.mrb[0].mxu0
  %1979 = vmatprep.mubr.f32.mxu0 0.0
  %1980 = vmatmul.mubr.f32.gmra.mrb[0].mxu0 %v1818
  %v1981 = vpop.f32.mrb[0].mxu0
  %v1982 = vadd.f32 %v1839, %v1981
  %v1983 = vpop.f32.mrb[0].mxu0
  %1984 = vdwg.mxu0
  %v1985 = vmul.f32 %v1907, %v660
  %v1986 = vmul.f32 %v1912, %v661
  %v1987 = vmul.f32 %v1917, %v662
  %v1988 = vmul.f32 %v1922, %v663
  %v1989 = vmul.f32 %v1927, %v664
  %v1990 = vmul.f32 %v1932, %v665
  %v1991 = vmul.f32 %v1937, %v666
  %v1992 = vmul.f32 %v1942, %v667
  %v1993 = vmul.f32 %v1947, %v668
  %v1994 = vmul.f32 %v1952, %v669
  %v1995 = vmul.f32 %v1957, %v670
  %v1996 = vmul.f32 %v1962, %v671
  %v1997 = vmul.f32 %v1967, %v672
  %v1998 = vmul.f32 %v1972, %v673
  %v1999 = vmul.f32 %v1977, %v674
  %v2000 = vmul.f32 %v1982, %v675
  %v2001 = vadd.f32 %v1985, %v1986
  %v2002 = vadd.f32 %v2001, %v1987
  %v2003 = vadd.f32 %v2002, %v1988
  %v2004 = vadd.f32 %v2003, %v1989
  %v2005 = vadd.f32 %v2004, %v1990
  %v2006 = vadd.f32 %v2005, %v1991
  %v2007 = vadd.f32 %v2006, %v1992
  %v2008 = vadd.f32 %v2007, %v1993
  %v2009 = vadd.f32 %v2008, %v1994
  %v2010 = vadd.f32 %v2009, %v1995
  %v2011 = vadd.f32 %v2010, %v1996
  %v2012 = vadd.f32 %v2011, %v1997
  %v2013 = vadd.f32 %v2012, %v1998
  %v2014 = vadd.f32 %v2013, %v1999
  %v2015 = vadd.f32 %v2014, %v2000
  %v2016 = vrot.slane %v2015, 4
  %v2017 = vadd.f32 %v2015, %v2016
  %v2018 = vrot.slane %v2017, 2
  %v2019 = vadd.f32 %v2017, %v2018
  %v2020 = vrot.slane %v2019, 1
  %v2021 = vadd.f32 %v2019, %v2020
  %v2022 = vmul.f32 %v2021, 0.03125
  %v2023 = vsub.f32 %v1907, %v2022
  %v2024 = vsub.f32 %v1912, %v2022
  %v2025 = vsub.f32 %v1917, %v2022
  %v2026 = vsub.f32 %v1922, %v2022
  %v2027 = vsub.f32 %v1927, %v2022
  %v2028 = vsub.f32 %v1932, %v2022
  %v2029 = vsub.f32 %v1937, %v2022
  %v2030 = vsub.f32 %v1942, %v2022
  %v2031 = vsub.f32 %v1947, %v2022
  %v2032 = vsub.f32 %v1952, %v2022
  %v2033 = vsub.f32 %v1957, %v2022
  %v2034 = vsub.f32 %v1962, %v2022
  %v2035 = vsub.f32 %v1967, %v2022
  %v2036 = vsub.f32 %v1972, %v2022
  %v2037 = vsub.f32 %v1977, %v2022
  %v2038 = vsub.f32 %v1982, %v2022
  %v2039 = vmul.f32 %v2023, %v2023
  %v2040 = vmul.f32 %v2024, %v2024
  %v2041 = vmul.f32 %v2025, %v2025
  %v2042 = vmul.f32 %v2026, %v2026
  %v2043 = vmul.f32 %v2027, %v2027
  %v2044 = vmul.f32 %v2028, %v2028
  %v2045 = vmul.f32 %v2029, %v2029
  %v2046 = vmul.f32 %v2030, %v2030
  %v2047 = vmul.f32 %v2031, %v2031
  %v2048 = vmul.f32 %v2032, %v2032
  %v2049 = vmul.f32 %v2033, %v2033
  %v2050 = vmul.f32 %v2034, %v2034
  %v2051 = vmul.f32 %v2035, %v2035
  %v2052 = vmul.f32 %v2036, %v2036
  %v2053 = vmul.f32 %v2037, %v2037
  %v2054 = vmul.f32 %v2038, %v2038
  %v2055 = vmul.f32 %v2039, %v660
  %v2056 = vmul.f32 %v2040, %v661
  %v2057 = vmul.f32 %v2041, %v662
  %v2058 = vmul.f32 %v2042, %v663
  %v2059 = vmul.f32 %v2043, %v664
  %v2060 = vmul.f32 %v2044, %v665
  %v2061 = vmul.f32 %v2045, %v666
  %v2062 = vmul.f32 %v2046, %v667
  %v2063 = vmul.f32 %v2047, %v668
  %v2064 = vmul.f32 %v2048, %v669
  %v2065 = vmul.f32 %v2049, %v670
  %v2066 = vmul.f32 %v2050, %v671
  %v2067 = vmul.f32 %v2051, %v672
  %v2068 = vmul.f32 %v2052, %v673
  %v2069 = vmul.f32 %v2053, %v674
  %v2070 = vmul.f32 %v2054, %v675
  %v2071 = vadd.f32 %v2055, %v2056
  %v2072 = vadd.f32 %v2071, %v2057
  %v2073 = vadd.f32 %v2072, %v2058
  %v2074 = vadd.f32 %v2073, %v2059
  %v2075 = vadd.f32 %v2074, %v2060
  %v2076 = vadd.f32 %v2075, %v2061
  %v2077 = vadd.f32 %v2076, %v2062
  %v2078 = vadd.f32 %v2077, %v2063
  %v2079 = vadd.f32 %v2078, %v2064
  %v2080 = vadd.f32 %v2079, %v2065
  %v2081 = vadd.f32 %v2080, %v2066
  %v2082 = vadd.f32 %v2081, %v2067
  %v2083 = vadd.f32 %v2082, %v2068
  %v2084 = vadd.f32 %v2083, %v2069
  %v2085 = vadd.f32 %v2084, %v2070
  %v2086 = vrot.slane %v2085, 4
  %v2087 = vadd.f32 %v2085, %v2086
  %v2088 = vrot.slane %v2087, 2
  %v2089 = vadd.f32 %v2087, %v2088
  %v2090 = vrot.slane %v2089, 1
  %v2091 = vadd.f32 %v2089, %v2090
  %v2092 = vmul.f32 %v2091, 0.03125
  %v2093 = vadd.f32 %v2092, 1e-05
  %v2094 = vrsqrt.pop %v2093
  %v2095 = vmul.f32 %v2023, %v2094
  %v2096 = vmul.f32 %v2024, %v2094
  %v2097 = vmul.f32 %v2025, %v2094
  %v2098 = vmul.f32 %v2026, %v2094
  %v2099 = vmul.f32 %v2027, %v2094
  %v2100 = vmul.f32 %v2028, %v2094
  %v2101 = vmul.f32 %v2029, %v2094
  %v2102 = vmul.f32 %v2030, %v2094
  %v2103 = vmul.f32 %v2031, %v2094
  %v2104 = vmul.f32 %v2032, %v2094
  %v2105 = vmul.f32 %v2033, %v2094
  %v2106 = vmul.f32 %v2034, %v2094
  %v2107 = vmul.f32 %v2035, %v2094
  %v2108 = vmul.f32 %v2036, %v2094
  %v2109 = vmul.f32 %v2037, %v2094
  %v2110 = vmul.f32 %v2038, %v2094
  %v2111 = vlaneseq
  %v2112 = vshrl.u32 %v2111, 7
  %v2113 = vsub.s32 1, %v2112
  %v2114 = vrot.slane %v1802, %v2113
  %v2115 = vmul.f32 %v2095, %v2114
  %v2116 = vmul.f32 %v2096, %v2114
  %v2117 = vmul.f32 %v2097, %v2114
  %v2118 = vmul.f32 %v2098, %v2114
  %v2119 = vmul.f32 %v2099, %v2114
  %v2120 = vmul.f32 %v2100, %v2114
  %v2121 = vmul.f32 %v2101, %v2114
  %v2122 = vmul.f32 %v2102, %v2114
  %v2123 = vmul.f32 %v2103, %v2114
  %v2124 = vmul.f32 %v2104, %v2114
  %v2125 = vmul.f32 %v2105, %v2114
  %v2126 = vmul.f32 %v2106, %v2114
  %v2127 = vmul.f32 %v2107, %v2114
  %v2128 = vmul.f32 %v2108, %v2114
  %v2129 = vmul.f32 %v2109, %v2114
  %v2130 = vmul.f32 %v2110, %v2114
  %v2131 = vlaneseq
  %v2132 = vshrl.u32 %v2131, 7
  %v2133 = vsub.s32 2, %v2132
  %v2134 = vrot.slane %v1802, %v2133
  %v2135 = vadd.f32 %v2115, %v2134
  %v2136 = vadd.f32 %v2116, %v2134
  %v2137 = vadd.f32 %v2117, %v2134
  %v2138 = vadd.f32 %v2118, %v2134
  %v2139 = vadd.f32 %v2119, %v2134
  %v2140 = vadd.f32 %v2120, %v2134
  %v2141 = vadd.f32 %v2121, %v2134
  %v2142 = vadd.f32 %v2122, %v2134
  %v2143 = vadd.f32 %v2123, %v2134
  %v2144 = vadd.f32 %v2124, %v2134
  %v2145 = vadd.f32 %v2125, %v2134
  %v2146 = vadd.f32 %v2126, %v2134
  %v2147 = vadd.f32 %v2127, %v2134
  %v2148 = vadd.f32 %v2128, %v2134
  %v2149 = vadd.f32 %v2129, %v2134
  %v2150 = vadd.f32 %v2130, %v2134
  %v2151 = vmax.f32 %v2135, 0.0
  %v2152 = vmax.f32 %v2136, 0.0
  %v2153 = vmax.f32 %v2137, 0.0
  %v2154 = vmax.f32 %v2138, 0.0
  %v2155 = vmax.f32 %v2139, 0.0
  %v2156 = vmax.f32 %v2140, 0.0
  %v2157 = vmax.f32 %v2141, 0.0
  %v2158 = vmax.f32 %v2142, 0.0
  %v2159 = vmax.f32 %v2143, 0.0
  %v2160 = vmax.f32 %v2144, 0.0
  %v2161 = vmax.f32 %v2145, 0.0
  %v2162 = vmax.f32 %v2146, 0.0
  %v2163 = vmax.f32 %v2147, 0.0
  %v2164 = vmax.f32 %v2148, 0.0
  %v2165 = vmax.f32 %v2149, 0.0
  %v2166 = vmax.f32 %v2150, 0.0
  %s2167 = scalar_lea.vmem %s6, 256
  %v2168 = vld [vmem:[%s2167] sm:$0xff]
  %v2169 = vld [vmem:[%s2167 + $0x8] sm:$0xff]
  %v2170 = vld [vmem:[%s2167 + $0x10] sm:$0xff]
  %v2171 = vld [vmem:[%s2167 + $0x18] sm:$0xff]
  %v2172 = vld [vmem:[%s2167 + $0x20] sm:$0xff]
  %v2173 = vld [vmem:[%s2167 + $0x28] sm:$0xff]
  %v2174 = vld [vmem:[%s2167 + $0x30] sm:$0xff]
  %v2175 = vld [vmem:[%s2167 + $0x38] sm:$0xff]
  %v2176 = vld [vmem:[%s2167 + $0x40] sm:$0xff]
  %v2177 = vld [vmem:[%s2167 + $0x48] sm:$0xff]
  %v2178 = vld [vmem:[%s2167 + $0x50] sm:$0xff]
  %v2179 = vld [vmem:[%s2167 + $0x58] sm:$0xff]
  %v2180 = vld [vmem:[%s2167 + $0x60] sm:$0xff]
  %v2181 = vld [vmem:[%s2167 + $0x68] sm:$0xff]
  %v2182 = vld [vmem:[%s2167 + $0x70] sm:$0xff]
  %v2183 = vld [vmem:[%s2167 + $0x78] sm:$0xff]
  %2184 = vmatprep.subr.mxu0 0.0
  %2185 = vmatpush1.msra.mxu0 %v2168
  %2186 = vmatprep.subr.mxu0 0.0
  %2187 = vmatpush1.msra.mxu0 %v2169
  %2188 = vmatprep.subr.mxu0 0.0
  %2189 = vmatpush1.msra.mxu0 %v2170
  %2190 = vmatprep.subr.mxu0 0.0
  %2191 = vmatpush1.msra.mxu0 %v2171
  %2192 = vmatprep.subr.mxu0 0.0
  %2193 = vmatpush1.msra.mxu0 %v2172
  %2194 = vmatprep.subr.mxu0 0.0
  %2195 = vmatpush1.msra.mxu0 %v2173
  %2196 = vmatprep.subr.mxu0 0.0
  %2197 = vmatpush1.msra.mxu0 %v2174
  %2198 = vmatprep.subr.mxu0 0.0
  %2199 = vmatpush1.msra.mxu0 %v2175
  %2200 = vmatprep.subr.mxu0 0.0
  %2201 = vmatpush1.msra.mxu0 %v2176
  %2202 = vmatprep.subr.mxu0 0.0
  %2203 = vmatpush1.msra.mxu0 %v2177
  %2204 = vmatprep.subr.mxu0 0.0
  %2205 = vmatpush1.msra.mxu0 %v2178
  %2206 = vmatprep.subr.mxu0 0.0
  %2207 = vmatpush1.msra.mxu0 %v2179
  %2208 = vmatprep.subr.mxu0 0.0
  %2209 = vmatpush1.msra.mxu0 %v2180
  %2210 = vmatprep.subr.mxu0 0.0
  %2211 = vmatpush1.msra.mxu0 %v2181
  %2212 = vmatprep.subr.mxu0 0.0
  %2213 = vmatpush1.msra.mxu0 %v2182
  %2214 = vmatprep.subr.mxu0 0.0
  %2215 = vmatpush1.msra.mxu0 %v2183
  %2216 = vmatprep.subr.mxu0 0.0
  %2217 = vmatpush1.msra.mxu0 0.0
  %2218 = vmatprep.subr.mxu0 0.0
  %2219 = vmatpush1.msra.mxu0 0.0
  %2220 = vmatprep.subr.mxu0 0.0
  %2221 = vmatpush1.msra.mxu0 0.0
  %2222 = vmatprep.subr.mxu0 0.0
  %2223 = vmatpush1.msra.mxu0 0.0
  %2224 = vmatprep.subr.mxu0 0.0
  %2225 = vmatpush1.msra.mxu0 0.0
  %2226 = vmatprep.subr.mxu0 0.0
  %2227 = vmatpush1.msra.mxu0 0.0
  %2228 = vmatprep.subr.mxu0 0.0
  %2229 = vmatpush1.msra.mxu0 0.0
  %2230 = vmatprep.subr.mxu0 0.0
  %2231 = vmatpush1.msra.mxu0 0.0
  %2232 = vmatprep.subr.mxu0 0.0
  %2233 = vmatpush1.msra.mxu0 0.0
  %2234 = vmatprep.subr.mxu0 0.0
  %2235 = vmatpush1.msra.mxu0 0.0
  %2236 = vmatprep.subr.mxu0 0.0
  %2237 = vmatpush1.msra.mxu0 0.0
  %2238 = vmatprep.subr.mxu0 0.0
  %2239 = vmatpush1.msra.mxu0 0.0
  %2240 = vmatprep.subr.mxu0 0.0
  %2241 = vmatpush1.msra.mxu0 0.0
  %2242 = vmatprep.subr.mxu0 0.0
  %2243 = vmatpush1.msra.mxu0 0.0
  %2244 = vmatprep.subr.mxu0 0.0
  %2245 = vmatpush1.msra.mxu0 0.0
  %2246 = vmatprep.subr.mxu0 0.0
  %2247 = vmatpush1.msra.mxu0 0.0
  %2248 = vmatprep.mubr.f32.mxu0 0.0
  %2249 = vmatmul.mubr.f32.gmra.mrb[0].mxu0 %v2151
  %v2250 = vpop.f32.mrb[0].mxu0
  %v2251 = vadd.f32 0.0, %v2250
  %v2252 = vpop.f32.mrb[0].mxu0
  %2253 = vmatprep.mubr.f32.mxu0 0.0
  %2254 = vmatmul.mubr.f32.gmra.mrb[0].mxu0 %v2152
  %v2255 = vpop.f32.mrb[0].mxu0
  %v2256 = vadd.f32 0.0, %v2255
  %v2257 = vpop.f32.mrb[0].mxu0
  %2258 = vmatprep.mubr.f32.mxu0 0.0
  %2259 = vmatmul.mubr.f32.gmra.mrb[0].mxu0 %v2153
  %v2260 = vpop.f32.mrb[0].mxu0
  %v2261 = vadd.f32 0.0, %v2260
  %v2262 = vpop.f32.mrb[0].mxu0
  %2263 = vmatprep.mubr.f32.mxu0 0.0
  %2264 = vmatmul.mubr.f32.gmra.mrb[0].mxu0 %v2154
  %v2265 = vpop.f32.mrb[0].mxu0
  %v2266 = vadd.f32 0.0, %v2265
  %v2267 = vpop.f32.mrb[0].mxu0
  %2268 = vmatprep.mubr.f32.mxu0 0.0
  %2269 = vmatmul.mubr.f32.gmra.mrb[0].mxu0 %v2155
  %v2270 = vpop.f32.mrb[0].mxu0
  %v2271 = vadd.f32 0.0, %v2270
  %v2272 = vpop.f32.mrb[0].mxu0
  %2273 = vmatprep.mubr.f32.mxu0 0.0
  %2274 = vmatmul.mubr.f32.gmra.mrb[0].mxu0 %v2156
  %v2275 = vpop.f32.mrb[0].mxu0
  %v2276 = vadd.f32 0.0, %v2275
  %v2277 = vpop.f32.mrb[0].mxu0
  %2278 = vmatprep.mubr.f32.mxu0 0.0
  %2279 = vmatmul.mubr.f32.gmra.mrb[0].mxu0 %v2157
  %v2280 = vpop.f32.mrb[0].mxu0
  %v2281 = vadd.f32 0.0, %v2280
  %v2282 = vpop.f32.mrb[0].mxu0
  %2283 = vmatprep.mubr.f32.mxu0 0.0
  %2284 = vmatmul.mubr.f32.gmra.mrb[0].mxu0 %v2158
  %v2285 = vpop.f32.mrb[0].mxu0
  %v2286 = vadd.f32 0.0, %v2285
  %v2287 = vpop.f32.mrb[0].mxu0
  %2288 = vmatprep.mubr.f32.mxu0 0.0
  %2289 = vmatmul.mubr.f32.gmra.mrb[0].mxu0 %v2159
  %v2290 = vpop.f32.mrb[0].mxu0
  %v2291 = vadd.f32 0.0, %v2290
  %v2292 = vpop.f32.mrb[0].mxu0
  %2293 = vmatprep.mubr.f32.mxu0 0.0
  %2294 = vmatmul.mubr.f32.gmra.mrb[0].mxu0 %v2160
  %v2295 = vpop.f32.mrb[0].mxu0
  %v2296 = vadd.f32 0.0, %v2295
  %v2297 = vpop.f32.mrb[0].mxu0
  %2298 = vmatprep.mubr.f32.mxu0 0.0
  %2299 = vmatmul.mubr.f32.gmra.mrb[0].mxu0 %v2161
  %v2300 = vpop.f32.mrb[0].mxu0
  %v2301 = vadd.f32 0.0, %v2300
  %v2302 = vpop.f32.mrb[0].mxu0
  %2303 = vmatprep.mubr.f32.mxu0 0.0
  %2304 = vmatmul.mubr.f32.gmra.mrb[0].mxu0 %v2162
  %v2305 = vpop.f32.mrb[0].mxu0
  %v2306 = vadd.f32 0.0, %v2305
  %v2307 = vpop.f32.mrb[0].mxu0
  %2308 = vmatprep.mubr.f32.mxu0 0.0
  %2309 = vmatmul.mubr.f32.gmra.mrb[0].mxu0 %v2163
  %v2310 = vpop.f32.mrb[0].mxu0
  %v2311 = vadd.f32 0.0, %v2310
  %v2312 = vpop.f32.mrb[0].mxu0
  %2313 = vmatprep.mubr.f32.mxu0 0.0
  %2314 = vmatmul.mubr.f32.gmra.mrb[0].mxu0 %v2164
  %v2315 = vpop.f32.mrb[0].mxu0
  %v2316 = vadd.f32 0.0, %v2315
  %v2317 = vpop.f32.mrb[0].mxu0
  %2318 = vmatprep.mubr.f32.mxu0 0.0
  %2319 = vmatmul.mubr.f32.gmra.mrb[0].mxu0 %v2165
  %v2320 = vpop.f32.mrb[0].mxu0
  %v2321 = vadd.f32 0.0, %v2320
  %v2322 = vpop.f32.mrb[0].mxu0
  %2323 = vmatprep.mubr.f32.mxu0 0.0
  %2324 = vmatmul.mubr.f32.gmra.mrb[0].mxu0 %v2166
  %v2325 = vpop.f32.mrb[0].mxu0
  %v2326 = vadd.f32 0.0, %v2325
  %v2327 = vpop.f32.mrb[0].mxu0
  %2328 = vdwg.mxu0
  %v2329 = vadd.f32 %v1785, %v2251
  %v2330 = vadd.f32 %v1786, %v2256
  %v2331 = vadd.f32 %v1787, %v2261
  %v2332 = vadd.f32 %v1788, %v2266
  %v2333 = vadd.f32 %v1789, %v2271
  %v2334 = vadd.f32 %v1790, %v2276
  %v2335 = vadd.f32 %v1791, %v2281
  %v2336 = vadd.f32 %v1792, %v2286
  %v2337 = vadd.f32 %v1793, %v2291
  %v2338 = vadd.f32 %v1794, %v2296
  %v2339 = vadd.f32 %v1795, %v2301
  %v2340 = vadd.f32 %v1796, %v2306
  %v2341 = vadd.f32 %v1797, %v2311
  %v2342 = vadd.f32 %v1798, %v2316
  %v2343 = vadd.f32 %v1799, %v2321
  %v2344 = vadd.f32 %v1800, %v2326
  %v2345 = vlaneseq
  %v2346 = vshrl.u32 %v2345, 7
  %v2347 = vsub.s32 3, %v2346
  %v2348 = vrot.slane %v1802, %v2347
  %v2349 = vadd.f32 %v2329, %v2348
  %v2350 = vadd.f32 %v2330, %v2348
  %v2351 = vadd.f32 %v2331, %v2348
  %v2352 = vadd.f32 %v2332, %v2348
  %v2353 = vadd.f32 %v2333, %v2348
  %v2354 = vadd.f32 %v2334, %v2348
  %v2355 = vadd.f32 %v2335, %v2348
  %v2356 = vadd.f32 %v2336, %v2348
  %v2357 = vadd.f32 %v2337, %v2348
  %v2358 = vadd.f32 %v2338, %v2348
  %v2359 = vadd.f32 %v2339, %v2348
  %v2360 = vadd.f32 %v2340, %v2348
  %v2361 = vadd.f32 %v2341, %v2348
  %v2362 = vadd.f32 %v2342, %v2348
  %v2363 = vadd.f32 %v2343, %v2348
  %v2364 = vadd.f32 %v2344, %v2348
  %2365 = vst [vmem:[%s7] sm:$0xff] %v2349
  %2366 = vst [vmem:[%s7 + $0x8] sm:$0xff] %v2350
  %2367 = vst [vmem:[%s7 + $0x10] sm:$0xff] %v2351
  %2368 = vst [vmem:[%s7 + $0x18] sm:$0xff] %v2352
  %2369 = vst [vmem:[%s7 + $0x20] sm:$0xff] %v2353
  %2370 = vst [vmem:[%s7 + $0x28] sm:$0xff] %v2354
  %2371 = vst [vmem:[%s7 + $0x30] sm:$0xff] %v2355
  %2372 = vst [vmem:[%s7 + $0x38] sm:$0xff] %v2356
  %2373 = vst [vmem:[%s7 + $0x40] sm:$0xff] %v2357
  %2374 = vst [vmem:[%s7 + $0x48] sm:$0xff] %v2358
  %2375 = vst [vmem:[%s7 + $0x50] sm:$0xff] %v2359
  %2376 = vst [vmem:[%s7 + $0x58] sm:$0xff] %v2360
  %2377 = vst [vmem:[%s7 + $0x60] sm:$0xff] %v2361
  %2378 = vst [vmem:[%s7 + $0x68] sm:$0xff] %v2362
  %2379 = vst [vmem:[%s7 + $0x70] sm:$0xff] %v2363
  %2380 = vst [vmem:[%s7 + $0x78] sm:$0xff] %v2364
  // Predicated region
  $region30: #{rgin_forward.1} parent=0 // pred_check
    _
  $region31: #{rgin_forward.1} parent=0 // pred_check_branch
    %2382 = sbr.rel (0) target = $region33
  $region32: #{rgin_forward.1} parent=0 // pred_region
    _
  $region33: #{rgin_forward.1} parent=0 // pred_fallthru
    _
  // Predicated region
  $region34: #{rgin_forward.1} parent=0 // pred_check
    _
  $region35: #{rgin_forward.1} parent=0 // pred_check_branch
    %2384 = sbr.rel (0) target = $region37
  $region36: #{rgin_forward.1} parent=0 // pred_region
    _
  $region37: #{rgin_forward.1} parent=0 // pred_fallthru
    _

</llo_original>
